<compile_context>
chip_gen: v6e
topology: v6e:2x2x1
jax: 0.10.0
libtpu: 0.0.40
codegen_flags: <defaults>
</compile_context>

<pallas_src>
import math
import functools

import jax
import jax.numpy as jnp
from jax.experimental import pallas as pl
from jax.experimental.pallas import tpu as pltpu


# ---------------------------------------------------------------------------
# Kernel 1: support = feat @ W   (each row tile computed exactly once)
# ---------------------------------------------------------------------------
def support_kernel(feat_ref, w_ref, out_ref):
    out_ref[...] = jnp.dot(
        feat_ref[...], w_ref[...], preferred_element_type=jnp.float32
    ).astype(out_ref.dtype)


# ---------------------------------------------------------------------------
# Kernel 2: out = adj @ support + bias, K-blocked with f32 VMEM accumulator
# ---------------------------------------------------------------------------
def aggregate_kernel(adj_ref, sup_ref, bias_ref, out_ref, acc_ref):
    k = pl.program_id(1)

    @pl.when(k == 0)
    def _():
        acc_ref[...] = jnp.zeros_like(acc_ref)

    acc_ref[...] += jnp.dot(
        adj_ref[...], sup_ref[...], preferred_element_type=jnp.float32
    )

    @pl.when(k == pl.num_programs(1) - 1)
    def _():
        out_ref[...] = (acc_ref[...] + bias_ref[...]).astype(out_ref.dtype)


def _pick_tile(n, preferred=256):
    """Largest MXU-friendly tile that divides n (256 for v6e/v7x, 128 for v5e)."""
    if n <= preferred:
        return n
    for t in (preferred, 128):
        if n % t == 0:
            return t
    return n  # fall back to full extent


_VMEM_LIMIT = 32 * 1024 * 1024  # fits the scoped budget on v5e/v6e/v7x


@functools.partial(
    jax.jit, static_argnames=("tile_m", "tile_k", "use_bf16_matmul")
)
def graph_convolution(
    feat, adj, weight, bias=None, *, tile_m=None, tile_k=None, use_bf16_matmul=False
):
    N, d_in = feat.shape
    d_in_w, d_out = weight.shape
    assert d_in_w == d_in
    assert adj.shape == (N, N)

    out_dtype = feat.dtype
    # dtype fed to the MXU for the dominant adj @ support matmul
    mm_dtype = jnp.bfloat16 if use_bf16_matmul else out_dtype

    if tile_m is None:
        tile_m = _pick_tile(N, 256)
    if tile_k is None:
        tile_k = _pick_tile(N, 256)
    assert N % tile_m == 0 and N % tile_k == 0

    if bias is None:
        bias2d = jnp.zeros((1, d_out), dtype=jnp.float32)
    else:
        bias2d = bias.reshape(1, d_out).astype(jnp.float32)

    # ---- pass 1: support = feat @ W (runs once, tiled over rows) ----------
    support = pl.pallas_call(
        support_kernel,
        out_shape=jax.ShapeDtypeStruct((N, d_out), mm_dtype),
        grid_spec=pltpu.PrefetchScalarGridSpec(
            num_scalar_prefetch=0,
            grid=(N // tile_m,),
            in_specs=[
                pl.BlockSpec((tile_m, d_in), lambda i: (i, 0)),
                pl.BlockSpec((d_in, d_out), lambda i: (0, 0)),
            ],
            out_specs=pl.BlockSpec((tile_m, d_out), lambda i: (i, 0)),
        ),
        compiler_params=pltpu.CompilerParams(
            dimension_semantics=("parallel",),
            vmem_limit_bytes=_VMEM_LIMIT,
        ),
    )(feat, weight)

    adj_in = adj.astype(mm_dtype)

    # ---- pass 2: out = adj @ support + bias, blocked over (rows, K) -------
    out = pl.pallas_call(
        aggregate_kernel,
        out_shape=jax.ShapeDtypeStruct((N, d_out), out_dtype),
        grid_spec=pltpu.PrefetchScalarGridSpec(
            num_scalar_prefetch=0,
            grid=(N // tile_m, N // tile_k),
            in_specs=[
                # adj: (row-tile, K-tile) block
                pl.BlockSpec((tile_m, tile_k), lambda i, k: (i, k)),
                # support: (K-tile, d_out) block
                pl.BlockSpec((tile_k, d_out), lambda i, k: (k, 0)),
                # bias: tiny constant block
                pl.BlockSpec((1, d_out), lambda i, k: (0, 0)),
            ],
            out_specs=pl.BlockSpec((tile_m, d_out), lambda i, k: (i, 0)),
            scratch_shapes=[pltpu.VMEM((tile_m, d_out), jnp.float32)],
        ),
        compiler_params=pltpu.CompilerParams(
            dimension_semantics=("parallel", "arbitrary"),
            vmem_limit_bytes=_VMEM_LIMIT,
        ),
    )(adj_in, support, bias2d)

    return out


def graph_convolution_ref(feat, adj, weight, bias):
    out = adj @ (feat @ weight)
    return out if bias is None else out + bias


if __name__ == "__main__":
    # Small but non-trivial shapes: N=512 exercises the (2, 2) grid of the
    # K-blocked aggregate kernel with 256-wide MXU tiles.
    N, D_IN, D_OUT = 512, 64, 128

    key = jax.random.PRNGKey(0)
    k_feat, k_adj, k_w, k_b = jax.random.split(key, 4)

    feat = jax.random.normal(k_feat, (N, D_IN), dtype=jnp.float32)

    # Dense "sparse" adjacency: random 0/1 mask with self loops, row-normalized.
    # TODO(synk): torch.spmm's sparse storage has no Pallas equivalent; adj is dense here.
    adj_raw = (jax.random.uniform(k_adj, (N, N)) < 0.05).astype(jnp.float32)
    adj_raw = adj_raw + jnp.eye(N, dtype=jnp.float32)
    adj = adj_raw / jnp.sum(adj_raw, axis=1, keepdims=True)

    # Parameter init mirrors the PyTorch module: uniform(-std, std), std=1/sqrt(D_OUT)
    std = 1.0 / math.sqrt(D_OUT)
    weight = jax.random.uniform(
        k_w, (D_IN, D_OUT), minval=-std, maxval=std, dtype=jnp.float32
    )
    bias = jax.random.uniform(
        k_b, (D_OUT,), minval=-std, maxval=std, dtype=jnp.float32
    )

    ref = graph_convolution_ref(feat, adj, weight, bias)

    # f32 path (exact module semantics)
    out = graph_convolution(feat, adj, weight, bias)
    out = jax.block_until_ready(out)
    assert out.shape == (N, D_OUT)
    assert jnp.allclose(out, ref, atol=1e-3, rtol=1e-3)

    # bf16 MXU-input path (f32 accumulation) — halves adj HBM traffic on v6e/v7x
    out_bf16 = graph_convolution(feat, adj, weight, bias, use_bf16_matmul=True)
    out_bf16 = jax.block_until_ready(out_bf16)
    assert jnp.allclose(out_bf16, ref, atol=5e-2, rtol=5e-2)

    print("KERNEL_OK")
</pallas_src>

<mosaic_0001>
module attributes {stable_mosaic.version = 11 : i64} {
  func.func @support_kernel(%arg0: i32, %arg1: memref<256x64xf32, #tpu.memory_space<vmem>>, %arg2: memref<64x128xf32, #tpu.memory_space<vmem>>, %arg3: memref<256x128xf32, #tpu.memory_space<vmem>>) attributes {dimension_semantics = [#tpu.dimension_semantics<parallel>], iteration_bounds = array<i64: 2>, scalar_prefetch = 0 : i64, scratch_operands = 0 : i64, tpu.core_type = #tpu.core_type<tc>, window_params = [{transform_indices = @transform_0, window_bounds = array<i64: 256, 64>}, {pipeline_mode = #tpu.pipeline_mode<synchronous>, transform_indices = @transform_1, window_bounds = array<i64: 64, 128>}, {transform_indices = @transform_2, window_bounds = array<i64: 256, 128>}]} {
    %c0 = arith.constant 0 : index
    %c0_0 = arith.constant 0 : index
    %0 = vector.load %arg1[%c0, %c0_0] : memref<256x64xf32, #tpu.memory_space<vmem>>, vector<256x64xf32>
    %c0_1 = arith.constant 0 : index
    %c0_2 = arith.constant 0 : index
    %1 = vector.load %arg2[%c0_1, %c0_2] : memref<64x128xf32, #tpu.memory_space<vmem>>, vector<64x128xf32>
    %cst = arith.constant dense<0.000000e+00> : vector<256x128xf32>
    %2 = tpu.matmul %0, %1, %cst {dimension_numbers = #tpu.dot_dimension_numbers<[1], [0], [0], [1], [0, 0, 1, 1], [], []>} : vector<256x64xf32>, vector<64x128xf32>, vector<256x128xf32> -> vector<256x128xf32>
    %c0_3 = arith.constant 0 : index
    %c0_4 = arith.constant 0 : index
    %3 = vector.load %arg3[%c0_3, %c0_4] : memref<256x128xf32, #tpu.memory_space<vmem>>, vector<256x128xf32>
    tpu.vector_store %arg3[%c0_3, %c0_4], %2 {strides = array<i32>} : memref<256x128xf32, #tpu.memory_space<vmem>>, vector<256x128xf32>,
    return
  }
  func.func @transform_0(%arg0: i32) -> (i32, i32) {
    %c0_i32 = arith.constant 0 : i32
    %c0_i32_0 = arith.constant 0 : i32
    return %arg0, %c0_i32 : i32, i32
  }
  func.func @transform_1(%arg0: i32) -> (i32, i32) {
    %c0_i32 = arith.constant 0 : i32
    %c0_i32_0 = arith.constant 0 : i32
    %c0_i32_1 = arith.constant 0 : i32
    return %c0_i32, %c0_i32_0 : i32, i32
  }
  func.func @transform_2(%arg0: i32) -> (i32, i32) {
    %c0_i32 = arith.constant 0 : i32
    %c0_i32_0 = arith.constant 0 : i32
    return %arg0, %c0_i32 : i32, i32
  }
}

module attributes {stable_mosaic.version = 11 : i64} {
  func.func @aggregate_kernel(%arg0: i32, %arg1: i32, %arg2: memref<256x256xf32, #tpu.memory_space<vmem>>, %arg3: memref<256x128xf32, #tpu.memory_space<vmem>>, %arg4: memref<1x128xf32, #tpu.memory_space<vmem>>, %arg5: memref<256x128xf32, #tpu.memory_space<vmem>>, %arg6: memref<256x128xf32, #tpu.memory_space<vmem>>) attributes {dimension_semantics = [#tpu.dimension_semantics<parallel>, #tpu.dimension_semantics<arbitrary>], iteration_bounds = array<i64: 2, 2>, scalar_prefetch = 0 : i64, scratch_operands = 1 : i64, tpu.core_type = #tpu.core_type<tc>, window_params = [{transform_indices = @transform_0, window_bounds = array<i64: 256, 256>}, {transform_indices = @transform_1, window_bounds = array<i64: 256, 128>}, {pipeline_mode = #tpu.pipeline_mode<synchronous>, transform_indices = @transform_2, window_bounds = array<i64: 1, 128>}, {transform_indices = @transform_3, window_bounds = array<i64: 256, 128>}]} {
    %c0_i32 = arith.constant 0 : i32
    %0 = arith.cmpi eq, %arg1, %c0_i32 : i32
    %1 = arith.extui %0 : i1 to i32
    %c0_i32_0 = arith.constant 0 : i32
    %2 = arith.cmpi ne, %1, %c0_i32_0 : i32
    scf.if %2 {
      %cst_9 = arith.constant 0.000000e+00 : f32
      %12 = vector.broadcast %cst_9 : f32 to vector<256x128xf32>
      %c0_10 = arith.constant 0 : index
      %c0_11 = arith.constant 0 : index
      %13 = vector.load %arg6[%c0_10, %c0_11] : memref<256x128xf32, #tpu.memory_space<vmem>>, vector<256x128xf32>
      tpu.vector_store %arg6[%c0_10, %c0_11], %12 {strides = array<i32>} : memref<256x128xf32, #tpu.memory_space<vmem>>, vector<256x128xf32>,
    } else {
    }
    %c0 = arith.constant 0 : index
    %c0_1 = arith.constant 0 : index
    %3 = vector.load %arg6[%c0, %c0_1] : memref<256x128xf32, #tpu.memory_space<vmem>>, vector<256x128xf32>
    %c0_2 = arith.constant 0 : index
    %c0_3 = arith.constant 0 : index
    %4 = vector.load %arg2[%c0_2, %c0_3] : memref<256x256xf32, #tpu.memory_space<vmem>>, vector<256x256xf32>
    %c0_4 = arith.constant 0 : index
    %c0_5 = arith.constant 0 : index
    %5 = vector.load %arg3[%c0_4, %c0_5] : memref<256x128xf32, #tpu.memory_space<vmem>>, vector<256x128xf32>
    %cst = arith.constant dense<0.000000e+00> : vector<256x128xf32>
    %6 = tpu.matmul %4, %5, %cst {dimension_numbers = #tpu.dot_dimension_numbers<[1], [0], [0], [1], [0, 0, 1, 1], [], []>} : vector<256x256xf32>, vector<256x128xf32>, vector<256x128xf32> -> vector<256x128xf32>
    %7 = arith.addf %3, %6 : vector<256x128xf32>
    %c0_6 = arith.constant 0 : index
    %c0_7 = arith.constant 0 : index
    %8 = vector.load %arg6[%c0_6, %c0_7] : memref<256x128xf32, #tpu.memory_space<vmem>>, vector<256x128xf32>
    tpu.vector_store %arg6[%c0_6, %c0_7], %7 {strides = array<i32>} : memref<256x128xf32, #tpu.memory_space<vmem>>, vector<256x128xf32>,
    %c1_i32 = arith.constant 1 : i32
    %9 = arith.cmpi eq, %arg1, %c1_i32 : i32
    %10 = arith.extui %9 : i1 to i32
    %c0_i32_8 = arith.constant 0 : i32
    %11 = arith.cmpi ne, %10, %c0_i32_8 : i32
    scf.if %11 {
      %c0_9 = arith.constant 0 : index
      %c0_10 = arith.constant 0 : index
      %12 = vector.load %arg6[%c0_9, %c0_10] : memref<256x128xf32, #tpu.memory_space<vmem>>, vector<256x128xf32>
      %c0_11 = arith.constant 0 : index
      %c0_12 = arith.constant 0 : index
      %13 = vector.load %arg4[%c0_11, %c0_12] : memref<1x128xf32, #tpu.memory_space<vmem>>, vector<1x128xf32>
      %14 = vector.broadcast %13 : vector<1x128xf32> to vector<256x128xf32>
      %15 = arith.addf %12, %14 : vector<256x128xf32>
      %c0_13 = arith.constant 0 : index
      %c0_14 = arith.constant 0 : index
      %16 = vector.load %arg5[%c0_13, %c0_14] : memref<256x128xf32, #tpu.memory_space<vmem>>, vector<256x128xf32>
      tpu.vector_store %arg5[%c0_13, %c0_14], %15 {strides = array<i32>} : memref<256x128xf32, #tpu.memory_space<vmem>>, vector<256x128xf32>,
    } else {
    }
    return
  }
  func.func @transform_0(%arg0: i32, %arg1: i32) -> (i32, i32) {
    %c0_i32 = arith.constant 0 : i32
    return %arg0, %arg1 : i32, i32
  }
  func.func @transform_1(%arg0: i32, %arg1: i32) -> (i32, i32) {
    %c0_i32 = arith.constant 0 : i32
    %c0_i32_0 = arith.constant 0 : i32
    return %arg1, %c0_i32 : i32, i32
  }
  func.func @transform_2(%arg0: i32, %arg1: i32) -> (i32, i32) {
    %c0_i32 = arith.constant 0 : i32
    %c0_i32_0 = arith.constant 0 : i32
    %c0_i32_1 = arith.constant 0 : i32
    return %c0_i32, %c0_i32_0 : i32, i32
  }
  func.func @transform_3(%arg0: i32, %arg1: i32) -> (i32, i32) {
    %c0_i32 = arith.constant 0 : i32
    %c0_i32_0 = arith.constant 0 : i32
    return %arg0, %c0_i32 : i32, i32
  }
}

</mosaic_0001>

<llo_original>
// kernel: graph_convolution.2
$region0: #{graph_convolution.2}
  #allocation0 [shape = 'u32[]', space=smem, size = 0x4, offset = 0x4, fixed_abs, tag = 'smem constant byte address 0x4 - core index']
  #allocation1 [shape = 'u32[144,128]{1,0:T(1,128)}', space=vmem, size = 0x12000, scoped, tag = 'internal scratch']
  %s0 = inlined_call_operand.vmem [shape: f32[512,64], index: 0, kind: input, shape index: {}]
  %s1 = inlined_call_operand.vmem [shape: f32[64,128], index: 1, kind: input, shape index: {}]
  %s2 = inlined_call_operand.vmem [shape: f32[512,128], index: 2, kind: output, shape index: {}]
  %s3 = sld [smem:[#allocation0]]
  $region41: #{graph_convolution.2} parent=0
    _
  %s5 = ssub.s32 1, %s3
  %s6 = scalar_select 0, %s5, %s3
  loop: start=0, step=1, limit=4
  $region2: #{graph_convolution.2} parent=0 // loop_pre_header
    _
  $region3: #{graph_convolution.2} parent=0 // loop_header
    %s8 = sphi 0, %s12
    %p9 = scmp.ge.s32.totalorder %s8, 4
    %s18 = sphi 0, %s20
    %s21 = sphi 0, %s18
    %s22 = sphi 0, %s21
    %s38 = sphi 0, %s22
    %s42 = sphi 0, %s42
    %s44 = sphi 0, %s42
    %s45 = sphi 0, %s44
    %s59 = sphi 0, %s45
    %s65 = sphi 0, %s67
    %s68 = sphi 0, %s65
    %s69 = sphi 0, %s68
    %s85 = sphi 0, %s69
  $region4: #{graph_convolution.2} parent=0 // loop_header_branch
    %11 = sbr.rel (%p9) target = $region8
  $region5: #{graph_convolution.2} parent=0 // loop_body
    %s13 = ssub.s32 %s8, 1
    %s14 = ssub.s32 %s8, 2
    %s15 = sadd.s32 %s8, 1
    %s16 = ssub.s32 %s8, %s15
    %p17 = scmp.eq.s32.totalorder %s16, 0
    %s19 = sadd.s32 %s18, 1
    %s20 = scalar_select %p17, %s18, %s19
    %p23 = pneg %p17
    %p24 = scmp.eq.s32.totalorder %s8, 1
    %p25 = por %p23, %p24
    %p26 = scmp.ne.s32.totalorder %s18, %s21
    %p27 = scmp.eq.s32.totalorder %s8, 0
    %p28 = por %p26, %p27
    %p29 = scmp.ne.s32.totalorder %s18, %s21
    %p30 = scmp.eq.s32.totalorder %s13, 1
    %p31 = por %p29, %p30
    %p32 = scmp.ne.s32.totalorder %s21, %s22
    %p33 = scmp.eq.s32.totalorder %s13, 0
    %p34 = por %p32, %p33
    %p35 = scmp.ne.s32.totalorder %s21, %s22
    %p36 = scmp.eq.s32.totalorder %s14, 1
    %p37 = por %p35, %p36
    %p39 = scmp.ne.s32.totalorder %s22, %s38
    %p40 = scmp.eq.s32.totalorder %s14, 0
    %p41 = por %p39, %p40
    %s43 = sadd.s32 %s42, 1
    %p46 = scmp.eq.s32.totalorder %s8, 1
    %p47 = scmp.ne.s32.totalorder %s42, %s44
    %p48 = scmp.eq.s32.totalorder %s8, 0
    %p49 = por %p47, %p48
    %p50 = scmp.ne.s32.totalorder %s42, %s44
    %p51 = scmp.eq.s32.totalorder %s13, 1
    %p52 = por %p50, %p51
    %p53 = scmp.ne.s32.totalorder %s44, %s45
    %p54 = scmp.eq.s32.totalorder %s13, 0
    %p55 = por %p53, %p54
    %p56 = scmp.ne.s32.totalorder %s44, %s45
    %p57 = scmp.eq.s32.totalorder %s14, 1
    %p58 = por %p56, %p57
    %p60 = scmp.ne.s32.totalorder %s45, %s59
    %p61 = scmp.eq.s32.totalorder %s14, 0
    %p62 = por %p60, %p61
    %s63 = ssub.s32 %s8, %s15
    %p64 = scmp.eq.s32.totalorder %s63, 0
    %s66 = sadd.s32 %s65, 1
    %s67 = scalar_select %p64, %s65, %s66
    %p70 = pneg %p64
    %p71 = scmp.eq.s32.totalorder %s8, 1
    %p72 = por %p70, %p71
    %p73 = scmp.ne.s32.totalorder %s65, %s68
    %p74 = scmp.eq.s32.totalorder %s8, 0
    %p75 = por %p73, %p74
    %p76 = scmp.ne.s32.totalorder %s65, %s68
    %p77 = scmp.eq.s32.totalorder %s13, 1
    %p78 = por %p76, %p77
    %p79 = scmp.ne.s32.totalorder %s68, %s69
    %p80 = scmp.eq.s32.totalorder %s13, 0
    %p81 = por %p79, %p80
    %p82 = scmp.ne.s32.totalorder %s68, %s69
    %p83 = scmp.eq.s32.totalorder %s14, 1
    %p84 = por %p82, %p83
    %p86 = scmp.ne.s32.totalorder %s69, %s85
    %p87 = scmp.eq.s32.totalorder %s14, 0
    %p88 = por %p86, %p87
    %p89 = scmp.le.s32.totalorder 1, %s8
    %p90 = scmp.lt.s32.totalorder %s8, 3
    %p91 = pnand %p89, %p90
    %p92 = pneg %p91
    // Predicated region
    $region9: #{graph_convolution.2} parent=5 // pred_check
      _
    $region10: #{graph_convolution.2} parent=5 // pred_check_branch
      %94 = sbr.rel (%p91) target = $region12
    $region11: #{graph_convolution.2} parent=5 // pred_region
      %s95 = ssub.s32 %s8, 1
      // Predicated region
      $region13: #{graph_convolution.2} parent=11 // pred_check
        %p96 = pneg %p55
      $region14: #{graph_convolution.2} parent=11 // pred_check_branch
        %98 = sbr.rel (%p96) target = $region16
      $region15: #{graph_convolution.2} parent=11 // pred_region
        _
      $region16: #{graph_convolution.2} parent=11 // pred_fallthru
        _
    $region12: #{graph_convolution.2} parent=5 // pred_fallthru
      _
    %p99 = scmp.lt.s32.totalorder %s8, 2
    // Predicated region
    $region17: #{graph_convolution.2} parent=5 // pred_check
      %p100 = pneg %p99
    $region18: #{graph_convolution.2} parent=5 // pred_check_branch
      %102 = sbr.rel (%p100) target = $region20
    $region19: #{graph_convolution.2} parent=5 // pred_region
      // Predicated region
      $region21: #{graph_convolution.2} parent=19 // pred_check
        %p103 = pneg %p28
      $region22: #{graph_convolution.2} parent=19 // pred_check_branch
        %105 = sbr.rel (%p103) target = $region24
      $region23: #{graph_convolution.2} parent=19 // pred_region
        %s106 = smul.u32 32, %s8
        %p107 = scmp.lt.s32.totalorder %s106, 63
        %s108 = scalar_select %p107, %s106, 63
        %s109 = smul.addr %s108, 8
        %s110 = scalar_lea.vmem %s0, %s109
        %s111 = smul.u32 32, %s8
      $region24: #{graph_convolution.2} parent=19 // pred_fallthru
        _
    $region20: #{graph_convolution.2} parent=5 // pred_fallthru
      _
    %p112 = scmp.le.s32.totalorder 1, %s8
    %p113 = scmp.lt.s32.totalorder %s8, 3
    %p114 = pnand %p112, %p113
    %p115 = pneg %p114
    // Predicated region
    $region25: #{graph_convolution.2} parent=5 // pred_check
      _
    $region26: #{graph_convolution.2} parent=5 // pred_check_branch
      %117 = sbr.rel (%p114) target = $region28
    $region27: #{graph_convolution.2} parent=5 // pred_region
      %s118 = ssub.s32 %s8, 1
      %s119 = smul.u32 32, %s13
      %p120 = scmp.lt.s32.totalorder %s119, 63
      %s121 = scalar_select %p120, %s119, 63
      %s122 = smul.addr %s121, 8
      %s123 = scalar_lea.vmem %s0, %s122
      %p124 = pneg %p34
      %p125 = pneg %p31
      %p126 = pneg %p55
      %p127 = pneg %p52
      %p128 = pneg %p81
      %p129 = pneg %p78
      %s130 = smul.u32 32, %s13
      %p131 = scmp.lt.s32.totalorder %s130, 63
      %s132 = scalar_select %p131, %s130, 63
      %s133 = smul.addr %s132, 8
      %s134 = scalar_lea.vmem %s2, %s133
      %s135 = smul.u32 32, %s13
      %p136 = scmp.lt.s32.totalorder %s135, 63
      %s137 = scalar_select %p136, %s135, 63
      %s138 = smul.addr %s137, 8
      %s139 = scalar_lea.vmem %s0, %s138
      %s140 = smul.u32 32, %s13
      %s141 = smul.u32 32, %s13
      %p142 = scmp.lt.s32.totalorder %s141, 63
      %s143 = scalar_select %p142, %s141, 63
      %s144 = smul.addr %s143, 8
      %s145 = scalar_lea.vmem %s2, %s144
      %s146 = smul.u32 32, %s13
      %v147 = vld [vmem:[%s139] sm:$0xff]
      %v148 = vld [vmem:[%s139 + $0x8] sm:$0xff]
      %v149 = vld [vmem:[%s139 + $0x10] sm:$0xff]
      %v150 = vld [vmem:[%s139 + $0x18] sm:$0xff]
      %v151 = vld [vmem:[%s139 + $0x20] sm:$0xff]
      %v152 = vld [vmem:[%s139 + $0x28] sm:$0xff]
      %v153 = vld [vmem:[%s139 + $0x30] sm:$0xff]
      %v154 = vld [vmem:[%s139 + $0x38] sm:$0xff]
      %v155 = vld [vmem:[%s139 + $0x40] sm:$0xff]
      %v156 = vld [vmem:[%s139 + $0x48] sm:$0xff]
      %v157 = vld [vmem:[%s139 + $0x50] sm:$0xff]
      %v158 = vld [vmem:[%s139 + $0x58] sm:$0xff]
      %v159 = vld [vmem:[%s139 + $0x60] sm:$0xff]
      %v160 = vld [vmem:[%s139 + $0x68] sm:$0xff]
      %v161 = vld [vmem:[%s139 + $0x70] sm:$0xff]
      %v162 = vld [vmem:[%s139 + $0x78] sm:$0xff]
      %v163 = vld [vmem:[%s139 + $0x80] sm:$0xff]
      %v164 = vld [vmem:[%s139 + $0x88] sm:$0xff]
      %v165 = vld [vmem:[%s139 + $0x90] sm:$0xff]
      %v166 = vld [vmem:[%s139 + $0x98] sm:$0xff]
      %v167 = vld [vmem:[%s139 + $0xa0] sm:$0xff]
      %v168 = vld [vmem:[%s139 + $0xa8] sm:$0xff]
      %v169 = vld [vmem:[%s139 + $0xb0] sm:$0xff]
      %v170 = vld [vmem:[%s139 + $0xb8] sm:$0xff]
      %v171 = vld [vmem:[%s139 + $0xc0] sm:$0xff]
      %v172 = vld [vmem:[%s139 + $0xc8] sm:$0xff]
      %v173 = vld [vmem:[%s139 + $0xd0] sm:$0xff]
      %v174 = vld [vmem:[%s139 + $0xd8] sm:$0xff]
      %v175 = vld [vmem:[%s139 + $0xe0] sm:$0xff]
      %v176 = vld [vmem:[%s139 + $0xe8] sm:$0xff]
      %v177 = vld [vmem:[%s139 + $0xf0] sm:$0xff]
      %v178 = vld [vmem:[%s139 + $0xf8] sm:$0xff]
      %v179 = vld [vmem:[%s1] sm:$0xff]
      %v180 = vld [vmem:[%s1 + $0x8] sm:$0xff]
      %v181 = vld [vmem:[%s1 + $0x10] sm:$0xff]
      %v182 = vld [vmem:[%s1 + $0x18] sm:$0xff]
      %v183 = vld [vmem:[%s1 + $0x20] sm:$0xff]
      %v184 = vld [vmem:[%s1 + $0x28] sm:$0xff]
      %v185 = vld [vmem:[%s1 + $0x30] sm:$0xff]
      %v186 = vld [vmem:[%s1 + $0x38] sm:$0xff]
      %vm187 = vcmask 523264
      %v189 = vsel %vm187, %v147, 0
      %v192 = vsel %vm187, %v148, 0
      %v195 = vsel %vm187, %v149, 0
      %v198 = vsel %vm187, %v150, 0
      %v201 = vsel %vm187, %v151, 0
      %v204 = vsel %vm187, %v152, 0
      %v207 = vsel %vm187, %v153, 0
      %v210 = vsel %vm187, %v154, 0
      %v213 = vsel %vm187, %v155, 0
      %v216 = vsel %vm187, %v156, 0
      %v219 = vsel %vm187, %v157, 0
      %v222 = vsel %vm187, %v158, 0
      %v225 = vsel %vm187, %v159, 0
      %v228 = vsel %vm187, %v160, 0
      %v231 = vsel %vm187, %v161, 0
      %v234 = vsel %vm187, %v162, 0
      %v237 = vsel %vm187, %v163, 0
      %v240 = vsel %vm187, %v164, 0
      %v243 = vsel %vm187, %v165, 0
      %v246 = vsel %vm187, %v166, 0
      %v249 = vsel %vm187, %v167, 0
      %v252 = vsel %vm187, %v168, 0
      %v255 = vsel %vm187, %v169, 0
      %v258 = vsel %vm187, %v170, 0
      %v261 = vsel %vm187, %v171, 0
      %v264 = vsel %vm187, %v172, 0
      %v267 = vsel %vm187, %v173, 0
      %v270 = vsel %vm187, %v174, 0
      %v273 = vsel %vm187, %v175, 0
      %v276 = vsel %vm187, %v176, 0
      %v279 = vsel %vm187, %v177, 0
      %v282 = vsel %vm187, %v178, 0
      %284 = vmatprep.subr.mxu0 0.0
      %285 = vmatpush1.msra.mxu0 0.0
      %286 = vmatprep.subr.mxu0 0.0
      %287 = vmatpush1.msra.mxu0 0.0
      %288 = vmatprep.subr.mxu0 0.0
      %289 = vmatpush1.msra.mxu0 0.0
      %290 = vmatprep.subr.mxu0 0.0
      %291 = vmatpush1.msra.mxu0 0.0
      %292 = vmatprep.subr.mxu0 0.0
      %293 = vmatpush1.msra.mxu0 0.0
      %294 = vmatprep.subr.mxu0 0.0
      %295 = vmatpush1.msra.mxu0 0.0
      %296 = vmatprep.subr.mxu0 0.0
      %297 = vmatpush1.msra.mxu0 0.0
      %298 = vmatprep.subr.mxu0 0.0
      %299 = vmatpush1.msra.mxu0 0.0
      %300 = vmatprep.subr.mxu0 0.0
      %301 = vmatpush1.msra.mxu0 %v186
      %302 = vmatprep.subr.mxu0 0.0
      %303 = vmatpush1.msra.mxu0 %v185
      %304 = vmatprep.subr.mxu0 0.0
      %305 = vmatpush1.msra.mxu0 %v184
      %306 = vmatprep.subr.mxu0 0.0
      %307 = vmatpush1.msra.mxu0 %v183
      %308 = vmatprep.subr.mxu0 0.0
      %309 = vmatpush1.msra.mxu0 %v182
      %310 = vmatprep.subr.mxu0 0.0
      %311 = vmatpush1.msra.mxu0 %v181
      %312 = vmatprep.subr.mxu0 0.0
      %313 = vmatpush1.msra.mxu0 %v180
      %314 = vmatprep.subr.mxu0 0.0
      %315 = vmatpush1.msra.mxu0 %v179
      %316 = vmatprep.subr.mxu0 0.0
      %317 = vmatpush2.msra.mxu0 0.0
      %318 = vmatprep.subr.mxu0 0.0
      %319 = vmatpush2.msra.mxu0 0.0
      %320 = vmatprep.subr.mxu0 0.0
      %321 = vmatpush2.msra.mxu0 0.0
      %322 = vmatprep.subr.mxu0 0.0
      %323 = vmatpush2.msra.mxu0 0.0
      %324 = vmatprep.subr.mxu0 0.0
      %325 = vmatpush2.msra.mxu0 0.0
      %326 = vmatprep.subr.mxu0 0.0
      %327 = vmatpush2.msra.mxu0 0.0
      %328 = vmatprep.subr.mxu0 0.0
      %329 = vmatpush2.msra.mxu0 0.0
      %330 = vmatprep.subr.mxu0 0.0
      %331 = vmatpush2.msra.mxu0 0.0
      %332 = vmatprep.subr.mxu0 0.0
      %333 = vmatpush2.msra.mxu0 0.0
      %334 = vmatprep.subr.mxu0 0.0
      %335 = vmatpush2.msra.mxu0 0.0
      %336 = vmatprep.subr.mxu0 0.0
      %337 = vmatpush2.msra.mxu0 0.0
      %338 = vmatprep.subr.mxu0 0.0
      %339 = vmatpush2.msra.mxu0 0.0
      %340 = vmatprep.subr.mxu0 0.0
      %341 = vmatpush2.msra.mxu0 0.0
      %342 = vmatprep.subr.mxu0 0.0
      %343 = vmatpush2.msra.mxu0 0.0
      %344 = vmatprep.subr.mxu0 0.0
      %345 = vmatpush2.msra.mxu0 0.0
      %346 = vmatprep.subr.mxu0 0.0
      %347 = vmatpush2.msra.mxu0 0.0
      %348 = vmatprep.mubr.f32.mxu0 0.0
      %349 = vmatmul.mubr.f32.gmra.mxu0 %v189
      %v350 = vpop.f32.mrf.mxu0
      %v351 = vadd.f32 0.0, %v350
      %v352 = vpop.f32.mrf.mxu0
      %353 = vmatprep.mubr.f32.mxu0 0.0
      %354 = vmatmul.mubr.f32.gmra.mxu0 %v192
      %v355 = vpop.f32.mrf.mxu0
      %v356 = vadd.f32 0.0, %v355
      %v357 = vpop.f32.mrf.mxu0
      %358 = vmatprep.mubr.f32.mxu0 0.0
      %359 = vmatmul.mubr.f32.gmra.mxu0 %v195
      %v360 = vpop.f32.mrf.mxu0
      %v361 = vadd.f32 0.0, %v360
      %v362 = vpop.f32.mrf.mxu0
      %363 = vmatprep.mubr.f32.mxu0 0.0
      %364 = vmatmul.mubr.f32.gmra.mxu0 %v198
      %v365 = vpop.f32.mrf.mxu0
      %v366 = vadd.f32 0.0, %v365
      %v367 = vpop.f32.mrf.mxu0
      %368 = vmatprep.mubr.f32.mxu0 0.0
      %369 = vmatmul.mubr.f32.gmra.mxu0 %v201
      %v370 = vpop.f32.mrf.mxu0
      %v371 = vadd.f32 0.0, %v370
      %v372 = vpop.f32.mrf.mxu0
      %373 = vmatprep.mubr.f32.mxu0 0.0
      %374 = vmatmul.mubr.f32.gmra.mxu0 %v204
      %v375 = vpop.f32.mrf.mxu0
      %v376 = vadd.f32 0.0, %v375
      %v377 = vpop.f32.mrf.mxu0
      %378 = vmatprep.mubr.f32.mxu0 0.0
      %379 = vmatmul.mubr.f32.gmra.mxu0 %v207
      %v380 = vpop.f32.mrf.mxu0
      %v381 = vadd.f32 0.0, %v380
      %v382 = vpop.f32.mrf.mxu0
      %383 = vmatprep.mubr.f32.mxu0 0.0
      %384 = vmatmul.mubr.f32.gmra.mxu0 %v210
      %v385 = vpop.f32.mrf.mxu0
      %v386 = vadd.f32 0.0, %v385
      %v387 = vpop.f32.mrf.mxu0
      %388 = vmatprep.mubr.f32.mxu0 0.0
      %389 = vmatmul.mubr.f32.gmra.mxu0 %v213
      %v390 = vpop.f32.mrf.mxu0
      %v391 = vadd.f32 0.0, %v390
      %v392 = vpop.f32.mrf.mxu0
      %393 = vmatprep.mubr.f32.mxu0 0.0
      %394 = vmatmul.mubr.f32.gmra.mxu0 %v216
      %v395 = vpop.f32.mrf.mxu0
      %v396 = vadd.f32 0.0, %v395
      %v397 = vpop.f32.mrf.mxu0
      %398 = vmatprep.mubr.f32.mxu0 0.0
      %399 = vmatmul.mubr.f32.gmra.mxu0 %v219
      %v400 = vpop.f32.mrf.mxu0
      %v401 = vadd.f32 0.0, %v400
      %v402 = vpop.f32.mrf.mxu0
      %403 = vmatprep.mubr.f32.mxu0 0.0
      %404 = vmatmul.mubr.f32.gmra.mxu0 %v222
      %v405 = vpop.f32.mrf.mxu0
      %v406 = vadd.f32 0.0, %v405
      %v407 = vpop.f32.mrf.mxu0
      %408 = vmatprep.mubr.f32.mxu0 0.0
      %409 = vmatmul.mubr.f32.gmra.mxu0 %v225
      %v410 = vpop.f32.mrf.mxu0
      %v411 = vadd.f32 0.0, %v410
      %v412 = vpop.f32.mrf.mxu0
      %413 = vmatprep.mubr.f32.mxu0 0.0
      %414 = vmatmul.mubr.f32.gmra.mxu0 %v228
      %v415 = vpop.f32.mrf.mxu0
      %v416 = vadd.f32 0.0, %v415
      %v417 = vpop.f32.mrf.mxu0
      %418 = vmatprep.mubr.f32.mxu0 0.0
      %419 = vmatmul.mubr.f32.gmra.mxu0 %v231
      %v420 = vpop.f32.mrf.mxu0
      %v421 = vadd.f32 0.0, %v420
      %v422 = vpop.f32.mrf.mxu0
      %423 = vmatprep.mubr.f32.mxu0 0.0
      %424 = vmatmul.mubr.f32.gmra.mxu0 %v234
      %v425 = vpop.f32.mrf.mxu0
      %v426 = vadd.f32 0.0, %v425
      %v427 = vpop.f32.mrf.mxu0
      %428 = vmatprep.mubr.f32.mxu0 0.0
      %429 = vmatmul.mubr.f32.gmra.mxu0 %v237
      %v430 = vpop.f32.mrf.mxu0
      %v431 = vadd.f32 0.0, %v430
      %v432 = vpop.f32.mrf.mxu0
      %433 = vmatprep.mubr.f32.mxu0 0.0
      %434 = vmatmul.mubr.f32.gmra.mxu0 %v240
      %v435 = vpop.f32.mrf.mxu0
      %v436 = vadd.f32 0.0, %v435
      %v437 = vpop.f32.mrf.mxu0
      %438 = vmatprep.mubr.f32.mxu0 0.0
      %439 = vmatmul.mubr.f32.gmra.mxu0 %v243
      %v440 = vpop.f32.mrf.mxu0
      %v441 = vadd.f32 0.0, %v440
      %v442 = vpop.f32.mrf.mxu0
      %443 = vmatprep.mubr.f32.mxu0 0.0
      %444 = vmatmul.mubr.f32.gmra.mxu0 %v246
      %v445 = vpop.f32.mrf.mxu0
      %v446 = vadd.f32 0.0, %v445
      %v447 = vpop.f32.mrf.mxu0
      %448 = vmatprep.mubr.f32.mxu0 0.0
      %449 = vmatmul.mubr.f32.gmra.mxu0 %v249
      %v450 = vpop.f32.mrf.mxu0
      %v451 = vadd.f32 0.0, %v450
      %v452 = vpop.f32.mrf.mxu0
      %453 = vmatprep.mubr.f32.mxu0 0.0
      %454 = vmatmul.mubr.f32.gmra.mxu0 %v252
      %v455 = vpop.f32.mrf.mxu0
      %v456 = vadd.f32 0.0, %v455
      %v457 = vpop.f32.mrf.mxu0
      %458 = vmatprep.mubr.f32.mxu0 0.0
      %459 = vmatmul.mubr.f32.gmra.mxu0 %v255
      %v460 = vpop.f32.mrf.mxu0
      %v461 = vadd.f32 0.0, %v460
      %v462 = vpop.f32.mrf.mxu0
      %463 = vmatprep.mubr.f32.mxu0 0.0
      %464 = vmatmul.mubr.f32.gmra.mxu0 %v258
      %v465 = vpop.f32.mrf.mxu0
      %v466 = vadd.f32 0.0, %v465
      %v467 = vpop.f32.mrf.mxu0
      %468 = vmatprep.mubr.f32.mxu0 0.0
      %469 = vmatmul.mubr.f32.gmra.mxu0 %v261
      %v470 = vpop.f32.mrf.mxu0
      %v471 = vadd.f32 0.0, %v470
      %v472 = vpop.f32.mrf.mxu0
      %473 = vmatprep.mubr.f32.mxu0 0.0
      %474 = vmatmul.mubr.f32.gmra.mxu0 %v264
      %v475 = vpop.f32.mrf.mxu0
      %v476 = vadd.f32 0.0, %v475
      %v477 = vpop.f32.mrf.mxu0
      %478 = vmatprep.mubr.f32.mxu0 0.0
      %479 = vmatmul.mubr.f32.gmra.mxu0 %v267
      %v480 = vpop.f32.mrf.mxu0
      %v481 = vadd.f32 0.0, %v480
      %v482 = vpop.f32.mrf.mxu0
      %483 = vmatprep.mubr.f32.mxu0 0.0
      %484 = vmatmul.mubr.f32.gmra.mxu0 %v270
      %v485 = vpop.f32.mrf.mxu0
      %v486 = vadd.f32 0.0, %v485
      %v487 = vpop.f32.mrf.mxu0
      %488 = vmatprep.mubr.f32.mxu0 0.0
      %489 = vmatmul.mubr.f32.gmra.mxu0 %v273
      %v490 = vpop.f32.mrf.mxu0
      %v491 = vadd.f32 0.0, %v490
      %v492 = vpop.f32.mrf.mxu0
      %493 = vmatprep.mubr.f32.mxu0 0.0
      %494 = vmatmul.mubr.f32.gmra.mxu0 %v276
      %v495 = vpop.f32.mrf.mxu0
      %v496 = vadd.f32 0.0, %v495
      %v497 = vpop.f32.mrf.mxu0
      %498 = vmatprep.mubr.f32.mxu0 0.0
      %499 = vmatmul.mubr.f32.gmra.mxu0 %v279
      %v500 = vpop.f32.mrf.mxu0
      %v501 = vadd.f32 0.0, %v500
      %v502 = vpop.f32.mrf.mxu0
      %503 = vmatprep.mubr.f32.mxu0 0.0
      %504 = vmatmul.mubr.f32.gmra.mxu0 %v282
      %v505 = vpop.f32.mrf.mxu0
      %v506 = vadd.f32 0.0, %v505
      %v507 = vpop.f32.mrf.mxu0
      %508 = vdwg.mxu0
      %509 = vst [vmem:[%s145] sm:$0xff] %v351
      %510 = vst [vmem:[%s145 + $0x8] sm:$0xff] %v356
      %511 = vst [vmem:[%s145 + $0x10] sm:$0xff] %v361
      %512 = vst [vmem:[%s145 + $0x18] sm:$0xff] %v366
      %513 = vst [vmem:[%s145 + $0x20] sm:$0xff] %v371
      %514 = vst [vmem:[%s145 + $0x28] sm:$0xff] %v376
      %515 = vst [vmem:[%s145 + $0x30] sm:$0xff] %v381
      %516 = vst [vmem:[%s145 + $0x38] sm:$0xff] %v386
      %517 = vst [vmem:[%s145 + $0x40] sm:$0xff] %v391
      %518 = vst [vmem:[%s145 + $0x48] sm:$0xff] %v396
      %519 = vst [vmem:[%s145 + $0x50] sm:$0xff] %v401
      %520 = vst [vmem:[%s145 + $0x58] sm:$0xff] %v406
      %521 = vst [vmem:[%s145 + $0x60] sm:$0xff] %v411
      %522 = vst [vmem:[%s145 + $0x68] sm:$0xff] %v416
      %523 = vst [vmem:[%s145 + $0x70] sm:$0xff] %v421
      %524 = vst [vmem:[%s145 + $0x78] sm:$0xff] %v426
      %525 = vst [vmem:[%s145 + $0x80] sm:$0xff] %v431
      %526 = vst [vmem:[%s145 + $0x88] sm:$0xff] %v436
      %527 = vst [vmem:[%s145 + $0x90] sm:$0xff] %v441
      %528 = vst [vmem:[%s145 + $0x98] sm:$0xff] %v446
      %529 = vst [vmem:[%s145 + $0xa0] sm:$0xff] %v451
      %530 = vst [vmem:[%s145 + $0xa8] sm:$0xff] %v456
      %531 = vst [vmem:[%s145 + $0xb0] sm:$0xff] %v461
      %532 = vst [vmem:[%s145 + $0xb8] sm:$0xff] %v466
      %533 = vst [vmem:[%s145 + $0xc0] sm:$0xff] %v471
      %534 = vst [vmem:[%s145 + $0xc8] sm:$0xff] %v476
      %535 = vst [vmem:[%s145 + $0xd0] sm:$0xff] %v481
      %536 = vst [vmem:[%s145 + $0xd8] sm:$0xff] %v486
      %537 = vst [vmem:[%s145 + $0xe0] sm:$0xff] %v491
      %538 = vst [vmem:[%s145 + $0xe8] sm:$0xff] %v496
      %539 = vst [vmem:[%s145 + $0xf0] sm:$0xff] %v501
      %540 = vst [vmem:[%s145 + $0xf8] sm:$0xff] %v506
      %s541 = smul.u32 32, %s13
      %p542 = scmp.lt.s32.totalorder %s541, 63
      %s543 = scalar_select %p542, %s541, 63
      %s544 = smul.addr %s543, 8
      %s545 = scalar_lea.vmem %s2, %s544
      // Predicated region
      $region29: #{graph_convolution.2} parent=27 // pred_check
        %p546 = pneg %p78
      $region30: #{graph_convolution.2} parent=27 // pred_check_branch
        %548 = sbr.rel (%p546) target = $region32
      $region31: #{graph_convolution.2} parent=27 // pred_region
        %s549 = smul.u32 32, %s13
      $region32: #{graph_convolution.2} parent=27 // pred_fallthru
        _
    $region28: #{graph_convolution.2} parent=5 // pred_fallthru
      _
    %p550 = scmp.le.s32.totalorder 2, %s8
    // Predicated region
    $region33: #{graph_convolution.2} parent=5 // pred_check
      %p551 = pneg %p550
    $region34: #{graph_convolution.2} parent=5 // pred_check_branch
      %553 = sbr.rel (%p551) target = $region36
    $region35: #{graph_convolution.2} parent=5 // pred_region
      %s554 = ssub.s32 %s8, 2
      // Predicated region
      $region37: #{graph_convolution.2} parent=35 // pred_check
        %p555 = pneg %p84
      $region38: #{graph_convolution.2} parent=35 // pred_check_branch
        %557 = sbr.rel (%p555) target = $region40
      $region39: #{graph_convolution.2} parent=35 // pred_region
        %s558 = smul.u32 32, %s14
        %p559 = scmp.lt.s32.totalorder %s558, 63
        %s560 = scalar_select %p559, %s558, 63
        %s561 = smul.addr %s560, 8
        %s562 = scalar_lea.vmem %s2, %s561
      $region40: #{graph_convolution.2} parent=35 // pred_fallthru
        _
    $region36: #{graph_convolution.2} parent=5 // pred_fallthru
      _
  $region6: #{graph_convolution.2} parent=0 // loop_footer
    %s12 = sadd.s32 1, %s8
  $region7: #{graph_convolution.2} parent=0 // loop_footer_branch
    %7 = sbr.rel target = $region3
  $region8: #{graph_convolution.2} parent=0 // loop_exit
    _

// kernel: graph_convolution.3
$region0: #{graph_convolution.3}
  #allocation0 [shape = 'u32[]', space=smem, size = 0x4, offset = 0x4, fixed_abs, tag = 'smem constant byte address 0x4 - core index']
  #allocation1 [shape = 'u32[144,128]{1,0:T(1,128)}', space=vmem, size = 0x12000, scoped, tag = 'internal scratch']
  #allocation2 [shape = 'f32[256,128]{1,0:T(8,128)}', space=vmem, size = 0x20000, scoped, tag = 'scratch operand']
  %s0 = inlined_call_operand.hbm [shape: f32[512,512], index: 0, kind: input, shape index: {}]
  %s1 = inlined_call_operand.vmem [shape: f32[512,128], index: 1, kind: input, shape index: {}]
  %s2 = inlined_call_operand.vmem [shape: f32[1,128], index: 2, kind: input, shape index: {}]
  %s3 = inlined_call_operand.hbm [shape: f32[512,128], index: 3, kind: output, shape index: {}]
  %s4 = sld [smem:[#allocation0]]
  $region57: #{graph_convolution.3} parent=0
    _
  %s6 = ssub.s32 1, %s4
  %s7 = scalar_select 0, %s6, %s4
  $region1: #{graph_convolution.3} parent=0
    #allocation3 [shape = 'u8[524288]{0}', space=vmem, size = 0x80000, scoped, tag = 'input window, operand 0']
    #allocation4 [shape = 's32[2]{0}', space=sflag, size = 0x8, scoped, tag = 'scoped memory for graph_convolution.3']
    #allocation5 [shape = 's32[2]{0}', space=sflag, size = 0x8, scoped, tag = 'scoped memory for graph_convolution.3']
    #allocation6 [shape = 'u8[262144]{0}', space=vmem, size = 0x40000, scoped, tag = 'output window, operand 0']
    %8 = vsyncpa [#allocation4], 0
    %s9 = scalar_lea.sflag [#allocation4], 1
    %10 = vsyncpa %s9, 0
    %11 = vsyncpa [#allocation5], 0
    %s12 = scalar_lea.sflag [#allocation5], 1
    %13 = vsyncpa %s12, 0
    loop: start=0, step=1, limit=6
    $region2: #{graph_convolution.3} parent=1 // loop_pre_header
      _
    $region3: #{graph_convolution.3} parent=1 // loop_header
      %s15 = sphi 0, %s19
      %p16 = scmp.ge.s32.totalorder %s15, 6
      %s22 = sphi 0, %s34
      %s23 = sphi 0, %s30
      %s24 = sphi 0, %s22
      %s25 = sphi 0, %s23
      %s26 = sphi 0, %s24
      %s27 = sphi 0, %s25
      %s39 = sphi 0, %s41
      %s42 = sphi 0, %s39
      %s43 = sphi 0, %s42
      %s59 = sphi 0, %s43
      %s65 = sphi 0, %s67
      %s68 = sphi 0, %s65
      %s69 = sphi 0, %s68
      %s85 = sphi 0, %s69
      %s89 = sphi 0, %s89
      %s91 = sphi 0, %s89
      %s92 = sphi 0, %s91
      %s106 = sphi 0, %s92
      %s112 = sphi 0, %s114
      %s115 = sphi 0, %s112
      %s116 = sphi 0, %s115
      %s132 = sphi 0, %s116
    $region4: #{graph_convolution.3} parent=1 // loop_header_branch
      %18 = sbr.rel (%p16) target = $region8
    $region5: #{graph_convolution.3} parent=1 // loop_body
      %s20 = ssub.s32 %s15, 1
      %s21 = ssub.s32 %s15, 2
      %s28 = sadd.s32 1, %s23
      %p29 = scmp.ge.s32.totalorder %s28, 2
      %s30 = scalar_select %p29, 0, %s28
      %s31 = sadd.s32 1, %s22
      %s32 = scalar_select %p29, %s31, %s22
      %p33 = scmp.ge.s32.totalorder %s32, 2
      %s34 = scalar_select %p33, 0, %s32
      %s35 = ssub.s32 %s22, %s34
      %s36 = ssub.s32 %s23, %s30
      %s37 = sor.u32 %s35, %s36
      %p38 = scmp.eq.s32.totalorder %s37, 0
      %s40 = sadd.s32 %s39, 1
      %s41 = scalar_select %p38, %s39, %s40
      %p44 = pneg %p38
      %p45 = scmp.eq.s32.totalorder %s15, 3
      %p46 = por %p44, %p45
      %p47 = scmp.ne.s32.totalorder %s39, %s42
      %p48 = scmp.eq.s32.totalorder %s15, 0
      %p49 = por %p47, %p48
      %p50 = scmp.ne.s32.totalorder %s39, %s42
      %p51 = scmp.eq.s32.totalorder %s20, 3
      %p52 = por %p50, %p51
      %p53 = scmp.ne.s32.totalorder %s42, %s43
      %p54 = scmp.eq.s32.totalorder %s20, 0
      %p55 = por %p53, %p54
      %p56 = scmp.ne.s32.totalorder %s42, %s43
      %p57 = scmp.eq.s32.totalorder %s21, 3
      %p58 = por %p56, %p57
      %p60 = scmp.ne.s32.totalorder %s43, %s59
      %p61 = scmp.eq.s32.totalorder %s21, 0
      %p62 = por %p60, %p61
      %s63 = ssub.s32 %s23, %s30
      %p64 = scmp.eq.s32.totalorder %s63, 0
      %s66 = sadd.s32 %s65, 1
      %s67 = scalar_select %p64, %s65, %s66
      %p70 = pneg %p64
      %p71 = scmp.eq.s32.totalorder %s15, 3
      %p72 = por %p70, %p71
      %p73 = scmp.ne.s32.totalorder %s65, %s68
      %p74 = scmp.eq.s32.totalorder %s15, 0
      %p75 = por %p73, %p74
      %p76 = scmp.ne.s32.totalorder %s65, %s68
      %p77 = scmp.eq.s32.totalorder %s20, 3
      %p78 = por %p76, %p77
      %p79 = scmp.ne.s32.totalorder %s68, %s69
      %p80 = scmp.eq.s32.totalorder %s20, 0
      %p81 = por %p79, %p80
      %p82 = scmp.ne.s32.totalorder %s68, %s69
      %p83 = scmp.eq.s32.totalorder %s21, 3
      %p84 = por %p82, %p83
      %p86 = scmp.ne.s32.totalorder %s69, %s85
      %p87 = scmp.eq.s32.totalorder %s21, 0
      %p88 = por %p86, %p87
      %s90 = sadd.s32 %s89, 1
      %p93 = scmp.eq.s32.totalorder %s15, 3
      %p94 = scmp.ne.s32.totalorder %s89, %s91
      %p95 = scmp.eq.s32.totalorder %s15, 0
      %p96 = por %p94, %p95
      %p97 = scmp.ne.s32.totalorder %s89, %s91
      %p98 = scmp.eq.s32.totalorder %s20, 3
      %p99 = por %p97, %p98
      %p100 = scmp.ne.s32.totalorder %s91, %s92
      %p101 = scmp.eq.s32.totalorder %s20, 0
      %p102 = por %p100, %p101
      %p103 = scmp.ne.s32.totalorder %s91, %s92
      %p104 = scmp.eq.s32.totalorder %s21, 3
      %p105 = por %p103, %p104
      %p107 = scmp.ne.s32.totalorder %s92, %s106
      %p108 = scmp.eq.s32.totalorder %s21, 0
      %p109 = por %p107, %p108
      %s110 = ssub.s32 %s22, %s34
      %p111 = scmp.eq.s32.totalorder %s110, 0
      %s113 = sadd.s32 %s112, 1
      %s114 = scalar_select %p111, %s112, %s113
      %p117 = pneg %p111
      %p118 = scmp.eq.s32.totalorder %s15, 3
      %p119 = por %p117, %p118
      %p120 = scmp.ne.s32.totalorder %s112, %s115
      %p121 = scmp.eq.s32.totalorder %s15, 0
      %p122 = por %p120, %p121
      %p123 = scmp.ne.s32.totalorder %s112, %s115
      %p124 = scmp.eq.s32.totalorder %s20, 3
      %p125 = por %p123, %p124
      %p126 = scmp.ne.s32.totalorder %s115, %s116
      %p127 = scmp.eq.s32.totalorder %s20, 0
      %p128 = por %p126, %p127
      %p129 = scmp.ne.s32.totalorder %s115, %s116
      %p130 = scmp.eq.s32.totalorder %s21, 3
      %p131 = por %p129, %p130
      %p133 = scmp.ne.s32.totalorder %s116, %s132
      %p134 = scmp.eq.s32.totalorder %s21, 0
      %p135 = por %p133, %p134
      %p136 = scmp.le.s32.totalorder 1, %s15
      %p137 = scmp.lt.s32.totalorder %s15, 5
      %p138 = pnand %p136, %p137
      %p139 = pneg %p138
      // Predicated region
      $region9: #{graph_convolution.3} parent=5 // pred_check
        _
      $region10: #{graph_convolution.3} parent=5 // pred_check_branch
        %141 = sbr.rel (%p138) target = $region12
      $region11: #{graph_convolution.3} parent=5 // pred_region
        %s142 = ssub.s32 %s15, 1
        // Predicated region
        $region13: #{graph_convolution.3} parent=11 // pred_check
          %p143 = pneg %p102
        $region14: #{graph_convolution.3} parent=11 // pred_check_branch
          %145 = sbr.rel (%p143) target = $region16
        $region15: #{graph_convolution.3} parent=11 // pred_region
          _
        $region16: #{graph_convolution.3} parent=11 // pred_fallthru
          _
      $region12: #{graph_convolution.3} parent=5 // pred_fallthru
        _
      %p146 = scmp.lt.s32.totalorder %s15, 4
      // Predicated region
      $region17: #{graph_convolution.3} parent=5 // pred_check
        %p147 = pneg %p146
      $region18: #{graph_convolution.3} parent=5 // pred_check_branch
        %149 = sbr.rel (%p147) target = $region20
      $region19: #{graph_convolution.3} parent=5 // pred_region
        // Predicated region
        $region21: #{graph_convolution.3} parent=19 // pred_check
          %p150 = pneg %p49
        $region22: #{graph_convolution.3} parent=19 // pred_check_branch
          %152 = sbr.rel (%p150) target = $region24
        $region23: #{graph_convolution.3} parent=19 // pred_region
          %s153 = sand.u32 %s39, 1
          %s154 = scalar_lea.sflag [#allocation4], %s153
          %s155 = sand.u32 %s39, 1
          %s156 = smul.addr %s155, 512
          %s157 = scalar_lea.vmem [#allocation3], %s156
          %s158 = smul.u32 32, %s22
          %s159 = smul.u32 2, %s23
          %s161 = ssub.s32 8192, 8192
          %162 = vsyncadd %s154, %s161
          %s163 = smul.addr %s158, 4
          %s164 = sadd.s32 %s159, %s163
          %s165 = smul.addr %s164, 128
          %s166 = scalar_lea.hbm %s0, %s165
          %s167 = sshll.u32 %s157, 4
          %s168 = int_to_ptr.vmem [resolvable:$true] %s167
          %173 = dma.hbm_to_vmem [thread:$0]  %s166, 8192, %s168, %s154, 512, 256, 16
        $region24: #{graph_convolution.3} parent=19 // pred_fallthru
          _
        // Predicated region
        $region25: #{graph_convolution.3} parent=19 // pred_check
          %p174 = pneg %p75
        $region26: #{graph_convolution.3} parent=19 // pred_check_branch
          %176 = sbr.rel (%p174) target = $region28
        $region27: #{graph_convolution.3} parent=19 // pred_region
          %s177 = smul.u32 32, %s23
          %p178 = scmp.lt.s32.totalorder %s177, 63
          %s179 = scalar_select %p178, %s177, 63
          %s180 = smul.addr %s179, 8
          %s181 = scalar_lea.vmem %s1, %s180
          %s182 = smul.u32 32, %s23
        $region28: #{graph_convolution.3} parent=19 // pred_fallthru
          _
      $region20: #{graph_convolution.3} parent=5 // pred_fallthru
        _
      %p183 = scmp.le.s32.totalorder 1, %s15
      %p184 = scmp.lt.s32.totalorder %s15, 5
      %p185 = pnand %p183, %p184
      %p186 = pneg %p185
      // Predicated region
      $region29: #{graph_convolution.3} parent=5 // pred_check
        _
      $region30: #{graph_convolution.3} parent=5 // pred_check_branch
        %188 = sbr.rel (%p185) target = $region32
      $region31: #{graph_convolution.3} parent=5 // pred_region
        %s189 = ssub.s32 %s15, 1
        %s190 = sand.u32 %s42, 1
        %s191 = scalar_lea.sflag [#allocation4], %s190
        %s192 = sand.u32 %s42, 1
        %s193 = smul.addr %s192, 512
        %s194 = scalar_lea.vmem [#allocation3], %s193
        // Predicated region
        $region33: #{graph_convolution.3} parent=31 // pred_check
          %p195 = pneg %p55
        $region34: #{graph_convolution.3} parent=31 // pred_check_branch
          %197 = sbr.rel (%p195) target = $region36
        $region35: #{graph_convolution.3} parent=31 // pred_region
          %198 = dma.done %s191, 8192
        $region36: #{graph_convolution.3} parent=31 // pred_fallthru
          _
        %s199 = sand.u32 %s42, 1
        %s200 = scalar_lea.sflag [#allocation4], %s199
        %s201 = sand.u32 %s42, 1
        %s202 = smul.addr %s201, 512
        %s203 = scalar_lea.vmem [#allocation3], %s202
        %p204 = pneg %p55
        %p205 = pneg %p52
        %s206 = smul.u32 32, %s25
        %p207 = scmp.lt.s32.totalorder %s206, 63
        %s208 = scalar_select %p207, %s206, 63
        %s209 = smul.addr %s208, 8
        %s210 = scalar_lea.vmem %s1, %s209
        %p211 = pneg %p81
        %p212 = pneg %p78
        %p213 = pneg %p102
        %p214 = pneg %p99
        %p215 = pneg %p128
        %p216 = pneg %p125
        %s217 = sand.u32 %s115, 1
        %s218 = scalar_lea.sflag [#allocation5], %s217
        %s219 = sand.u32 %s115, 1
        %s220 = smul.addr %s219, 256
        %s221 = scalar_lea.vmem [#allocation6], %s220
        %s222 = smul.u32 32, %s24
        %s223 = smul.u32 2, %s25
        %s224 = smul.u32 32, %s25
        %p225 = scmp.lt.s32.totalorder %s224, 63
        %s226 = scalar_select %p225, %s224, 63
        %s227 = smul.addr %s226, 8
        %s228 = scalar_lea.vmem %s1, %s227
        %s229 = smul.u32 32, %s25
        %s230 = smul.u32 32, %s24
        %p231 = scmp.eq.s32.totalorder %s25, 0
        // Predicated region
        $region37: #{graph_convolution.3} parent=31 // pred_check
          %p232 = pneg %p231
        $region38: #{graph_convolution.3} parent=31 // pred_check_branch
          %234 = sbr.rel (%p232) target = $region40
        $region39: #{graph_convolution.3} parent=31 // pred_region
          %235 = vst [vmem:[#allocation2] sm:$0xff] 0.0
          %236 = vst [vmem:[#allocation2 + $0x8] sm:$0xff] 0.0
          %237 = vst [vmem:[#allocation2 + $0x10] sm:$0xff] 0.0
          %238 = vst [vmem:[#allocation2 + $0x18] sm:$0xff] 0.0
          %239 = vst [vmem:[#allocation2 + $0x20] sm:$0xff] 0.0
          %240 = vst [vmem:[#allocation2 + $0x28] sm:$0xff] 0.0
          %241 = vst [vmem:[#allocation2 + $0x30] sm:$0xff] 0.0
          %242 = vst [vmem:[#allocation2 + $0x38] sm:$0xff] 0.0
          %243 = vst [vmem:[#allocation2 + $0x40] sm:$0xff] 0.0
          %244 = vst [vmem:[#allocation2 + $0x48] sm:$0xff] 0.0
          %245 = vst [vmem:[#allocation2 + $0x50] sm:$0xff] 0.0
          %246 = vst [vmem:[#allocation2 + $0x58] sm:$0xff] 0.0
          %247 = vst [vmem:[#allocation2 + $0x60] sm:$0xff] 0.0
          %248 = vst [vmem:[#allocation2 + $0x68] sm:$0xff] 0.0
          %249 = vst [vmem:[#allocation2 + $0x70] sm:$0xff] 0.0
          %250 = vst [vmem:[#allocation2 + $0x78] sm:$0xff] 0.0
          %251 = vst [vmem:[#allocation2 + $0x80] sm:$0xff] 0.0
          %252 = vst [vmem:[#allocation2 + $0x88] sm:$0xff] 0.0
          %253 = vst [vmem:[#allocation2 + $0x90] sm:$0xff] 0.0
          %254 = vst [vmem:[#allocation2 + $0x98] sm:$0xff] 0.0
          %255 = vst [vmem:[#allocation2 + $0xa0] sm:$0xff] 0.0
          %256 = vst [vmem:[#allocation2 + $0xa8] sm:$0xff] 0.0
          %257 = vst [vmem:[#allocation2 + $0xb0] sm:$0xff] 0.0
          %258 = vst [vmem:[#allocation2 + $0xb8] sm:$0xff] 0.0
          %259 = vst [vmem:[#allocation2 + $0xc0] sm:$0xff] 0.0
          %260 = vst [vmem:[#allocation2 + $0xc8] sm:$0xff] 0.0
          %261 = vst [vmem:[#allocation2 + $0xd0] sm:$0xff] 0.0
          %262 = vst [vmem:[#allocation2 + $0xd8] sm:$0xff] 0.0
          %263 = vst [vmem:[#allocation2 + $0xe0] sm:$0xff] 0.0
          %264 = vst [vmem:[#allocation2 + $0xe8] sm:$0xff] 0.0
          %265 = vst [vmem:[#allocation2 + $0xf0] sm:$0xff] 0.0
          %266 = vst [vmem:[#allocation2 + $0xf8] sm:$0xff] 0.0
        $region40: #{graph_convolution.3} parent=31 // pred_fallthru
          _
        %v267 = vld [vmem:[#allocation2] sm:$0xff]
        %v268 = vld [vmem:[#allocation2 + $0x8] sm:$0xff]
        %v269 = vld [vmem:[#allocation2 + $0x10] sm:$0xff]
        %v270 = vld [vmem:[#allocation2 + $0x18] sm:$0xff]
        %v271 = vld [vmem:[#allocation2 + $0x20] sm:$0xff]
        %v272 = vld [vmem:[#allocation2 + $0x28] sm:$0xff]
        %v273 = vld [vmem:[#allocation2 + $0x30] sm:$0xff]
        %v274 = vld [vmem:[#allocation2 + $0x38] sm:$0xff]
        %v275 = vld [vmem:[#allocation2 + $0x40] sm:$0xff]
        %v276 = vld [vmem:[#allocation2 + $0x48] sm:$0xff]
        %v277 = vld [vmem:[#allocation2 + $0x50] sm:$0xff]
        %v278 = vld [vmem:[#allocation2 + $0x58] sm:$0xff]
        %v279 = vld [vmem:[#allocation2 + $0x60] sm:$0xff]
        %v280 = vld [vmem:[#allocation2 + $0x68] sm:$0xff]
        %v281 = vld [vmem:[#allocation2 + $0x70] sm:$0xff]
        %v282 = vld [vmem:[#allocation2 + $0x78] sm:$0xff]
        %v283 = vld [vmem:[#allocation2 + $0x80] sm:$0xff]
        %v284 = vld [vmem:[#allocation2 + $0x88] sm:$0xff]
        %v285 = vld [vmem:[#allocation2 + $0x90] sm:$0xff]
        %v286 = vld [vmem:[#allocation2 + $0x98] sm:$0xff]
        %v287 = vld [vmem:[#allocation2 + $0xa0] sm:$0xff]
        %v288 = vld [vmem:[#allocation2 + $0xa8] sm:$0xff]
        %v289 = vld [vmem:[#allocation2 + $0xb0] sm:$0xff]
        %v290 = vld [vmem:[#allocation2 + $0xb8] sm:$0xff]
        %v291 = vld [vmem:[#allocation2 + $0xc0] sm:$0xff]
        %v292 = vld [vmem:[#allocation2 + $0xc8] sm:$0xff]
        %v293 = vld [vmem:[#allocation2 + $0xd0] sm:$0xff]
        %v294 = vld [vmem:[#allocation2 + $0xd8] sm:$0xff]
        %v295 = vld [vmem:[#allocation2 + $0xe0] sm:$0xff]
        %v296 = vld [vmem:[#allocation2 + $0xe8] sm:$0xff]
        %v297 = vld [vmem:[#allocation2 + $0xf0] sm:$0xff]
        %v298 = vld [vmem:[#allocation2 + $0xf8] sm:$0xff]
        %v299 = vld [vmem:[%s194] sm:$0xff]
        %v300 = vld [vmem:[%s194 + $0x8] sm:$0xff]
        %v301 = vld [vmem:[%s194 + $0x10] sm:$0xff]
        %v302 = vld [vmem:[%s194 + $0x18] sm:$0xff]
        %v303 = vld [vmem:[%s194 + $0x20] sm:$0xff]
        %v304 = vld [vmem:[%s194 + $0x28] sm:$0xff]
        %v305 = vld [vmem:[%s194 + $0x30] sm:$0xff]
        %v306 = vld [vmem:[%s194 + $0x38] sm:$0xff]
        %v307 = vld [vmem:[%s194 + $0x40] sm:$0xff]
        %v308 = vld [vmem:[%s194 + $0x48] sm:$0xff]
        %v309 = vld [vmem:[%s194 + $0x50] sm:$0xff]
        %v310 = vld [vmem:[%s194 + $0x58] sm:$0xff]
        %v311 = vld [vmem:[%s194 + $0x60] sm:$0xff]
        %v312 = vld [vmem:[%s194 + $0x68] sm:$0xff]
        %v313 = vld [vmem:[%s194 + $0x70] sm:$0xff]
        %v314 = vld [vmem:[%s194 + $0x78] sm:$0xff]
        %v315 = vld [vmem:[%s194 + $0x80] sm:$0xff]
        %v316 = vld [vmem:[%s194 + $0x88] sm:$0xff]
        %v317 = vld [vmem:[%s194 + $0x90] sm:$0xff]
        %v318 = vld [vmem:[%s194 + $0x98] sm:$0xff]
        %v319 = vld [vmem:[%s194 + $0xa0] sm:$0xff]
        %v320 = vld [vmem:[%s194 + $0xa8] sm:$0xff]
        %v321 = vld [vmem:[%s194 + $0xb0] sm:$0xff]
        %v322 = vld [vmem:[%s194 + $0xb8] sm:$0xff]
        %v323 = vld [vmem:[%s194 + $0xc0] sm:$0xff]
        %v324 = vld [vmem:[%s194 + $0xc8] sm:$0xff]
        %v325 = vld [vmem:[%s194 + $0xd0] sm:$0xff]
        %v326 = vld [vmem:[%s194 + $0xd8] sm:$0xff]
        %v327 = vld [vmem:[%s194 + $0xe0] sm:$0xff]
        %v328 = vld [vmem:[%s194 + $0xe8] sm:$0xff]
        %v329 = vld [vmem:[%s194 + $0xf0] sm:$0xff]
        %v330 = vld [vmem:[%s194 + $0xf8] sm:$0xff]
        %v331 = vld [vmem:[%s194 + $0x100] sm:$0xff]
        %v332 = vld [vmem:[%s194 + $0x108] sm:$0xff]
        %v333 = vld [vmem:[%s194 + $0x110] sm:$0xff]
        %v334 = vld [vmem:[%s194 + $0x118] sm:$0xff]
        %v335 = vld [vmem:[%s194 + $0x120] sm:$0xff]
        %v336 = vld [vmem:[%s194 + $0x128] sm:$0xff]
        %v337 = vld [vmem:[%s194 + $0x130] sm:$0xff]
        %v338 = vld [vmem:[%s194 + $0x138] sm:$0xff]
        %v339 = vld [vmem:[%s194 + $0x140] sm:$0xff]
        %v340 = vld [vmem:[%s194 + $0x148] sm:$0xff]
        %v341 = vld [vmem:[%s194 + $0x150] sm:$0xff]
        %v342 = vld [vmem:[%s194 + $0x158] sm:$0xff]
        %v343 = vld [vmem:[%s194 + $0x160] sm:$0xff]
        %v344 = vld [vmem:[%s194 + $0x168] sm:$0xff]
        %v345 = vld [vmem:[%s194 + $0x170] sm:$0xff]
        %v346 = vld [vmem:[%s194 + $0x178] sm:$0xff]
        %v347 = vld [vmem:[%s194 + $0x180] sm:$0xff]
        %v348 = vld [vmem:[%s194 + $0x188] sm:$0xff]
        %v349 = vld [vmem:[%s194 + $0x190] sm:$0xff]
        %v350 = vld [vmem:[%s194 + $0x198] sm:$0xff]
        %v351 = vld [vmem:[%s194 + $0x1a0] sm:$0xff]
        %v352 = vld [vmem:[%s194 + $0x1a8] sm:$0xff]
        %v353 = vld [vmem:[%s194 + $0x1b0] sm:$0xff]
        %v354 = vld [vmem:[%s194 + $0x1b8] sm:$0xff]
        %v355 = vld [vmem:[%s194 + $0x1c0] sm:$0xff]
        %v356 = vld [vmem:[%s194 + $0x1c8] sm:$0xff]
        %v357 = vld [vmem:[%s194 + $0x1d0] sm:$0xff]
        %v358 = vld [vmem:[%s194 + $0x1d8] sm:$0xff]
        %v359 = vld [vmem:[%s194 + $0x1e0] sm:$0xff]
        %v360 = vld [vmem:[%s194 + $0x1e8] sm:$0xff]
        %v361 = vld [vmem:[%s194 + $0x1f0] sm:$0xff]
        %v362 = vld [vmem:[%s194 + $0x1f8] sm:$0xff]
        %v363 = vld [vmem:[%s228] sm:$0xff]
        %v364 = vld [vmem:[%s228 + $0x8] sm:$0xff]
        %v365 = vld [vmem:[%s228 + $0x10] sm:$0xff]
        %v366 = vld [vmem:[%s228 + $0x18] sm:$0xff]
        %v367 = vld [vmem:[%s228 + $0x20] sm:$0xff]
        %v368 = vld [vmem:[%s228 + $0x28] sm:$0xff]
        %v369 = vld [vmem:[%s228 + $0x30] sm:$0xff]
        %v370 = vld [vmem:[%s228 + $0x38] sm:$0xff]
        %v371 = vld [vmem:[%s228 + $0x40] sm:$0xff]
        %v372 = vld [vmem:[%s228 + $0x48] sm:$0xff]
        %v373 = vld [vmem:[%s228 + $0x50] sm:$0xff]
        %v374 = vld [vmem:[%s228 + $0x58] sm:$0xff]
        %v375 = vld [vmem:[%s228 + $0x60] sm:$0xff]
        %v376 = vld [vmem:[%s228 + $0x68] sm:$0xff]
        %v377 = vld [vmem:[%s228 + $0x70] sm:$0xff]
        %v378 = vld [vmem:[%s228 + $0x78] sm:$0xff]
        %v379 = vld [vmem:[%s228 + $0x80] sm:$0xff]
        %v380 = vld [vmem:[%s228 + $0x88] sm:$0xff]
        %v381 = vld [vmem:[%s228 + $0x90] sm:$0xff]
        %v382 = vld [vmem:[%s228 + $0x98] sm:$0xff]
        %v383 = vld [vmem:[%s228 + $0xa0] sm:$0xff]
        %v384 = vld [vmem:[%s228 + $0xa8] sm:$0xff]
        %v385 = vld [vmem:[%s228 + $0xb0] sm:$0xff]
        %v386 = vld [vmem:[%s228 + $0xb8] sm:$0xff]
        %v387 = vld [vmem:[%s228 + $0xc0] sm:$0xff]
        %v388 = vld [vmem:[%s228 + $0xc8] sm:$0xff]
        %v389 = vld [vmem:[%s228 + $0xd0] sm:$0xff]
        %v390 = vld [vmem:[%s228 + $0xd8] sm:$0xff]
        %v391 = vld [vmem:[%s228 + $0xe0] sm:$0xff]
        %v392 = vld [vmem:[%s228 + $0xe8] sm:$0xff]
        %v393 = vld [vmem:[%s228 + $0xf0] sm:$0xff]
        %v394 = vld [vmem:[%s228 + $0xf8] sm:$0xff]
        %395 = vmatprep.subr.mxu0 0.0
        %396 = vmatpush1.msra.mxu0 %v378
        %397 = vmatprep.subr.mxu0 0.0
        %398 = vmatpush1.msra.mxu0 %v377
        %399 = vmatprep.subr.mxu0 0.0
        %400 = vmatpush1.msra.mxu0 %v376
        %401 = vmatprep.subr.mxu0 0.0
        %402 = vmatpush1.msra.mxu0 %v375
        %403 = vmatprep.subr.mxu0 0.0
        %404 = vmatpush1.msra.mxu0 %v374
        %405 = vmatprep.subr.mxu0 0.0
        %406 = vmatpush1.msra.mxu0 %v373
        %407 = vmatprep.subr.mxu0 0.0
        %408 = vmatpush1.msra.mxu0 %v372
        %409 = vmatprep.subr.mxu0 0.0
        %410 = vmatpush1.msra.mxu0 %v371
        %411 = vmatprep.subr.mxu0 0.0
        %412 = vmatpush1.msra.mxu0 %v370
        %413 = vmatprep.subr.mxu0 0.0
        %414 = vmatpush1.msra.mxu0 %v369
        %415 = vmatprep.subr.mxu0 0.0
        %416 = vmatpush1.msra.mxu0 %v368
        %417 = vmatprep.subr.mxu0 0.0
        %418 = vmatpush1.msra.mxu0 %v367
        %419 = vmatprep.subr.mxu0 0.0
        %420 = vmatpush1.msra.mxu0 %v366
        %421 = vmatprep.subr.mxu0 0.0
        %422 = vmatpush1.msra.mxu0 %v365
        %423 = vmatprep.subr.mxu0 0.0
        %424 = vmatpush1.msra.mxu0 %v364
        %425 = vmatprep.subr.mxu0 0.0
        %426 = vmatpush1.msra.mxu0 %v363
        %427 = vmatprep.subr.mxu0 0.0
        %428 = vmatpush2.msra.mxu0 %v394
        %429 = vmatprep.subr.mxu0 0.0
        %430 = vmatpush2.msra.mxu0 %v393
        %431 = vmatprep.subr.mxu0 0.0
        %432 = vmatpush2.msra.mxu0 %v392
        %433 = vmatprep.subr.mxu0 0.0
        %434 = vmatpush2.msra.mxu0 %v391
        %435 = vmatprep.subr.mxu0 0.0
        %436 = vmatpush2.msra.mxu0 %v390
        %437 = vmatprep.subr.mxu0 0.0
        %438 = vmatpush2.msra.mxu0 %v389
        %439 = vmatprep.subr.mxu0 0.0
        %440 = vmatpush2.msra.mxu0 %v388
        %441 = vmatprep.subr.mxu0 0.0
        %442 = vmatpush2.msra.mxu0 %v387
        %443 = vmatprep.subr.mxu0 0.0
        %444 = vmatpush2.msra.mxu0 %v386
        %445 = vmatprep.subr.mxu0 0.0
        %446 = vmatpush2.msra.mxu0 %v385
        %447 = vmatprep.subr.mxu0 0.0
        %448 = vmatpush2.msra.mxu0 %v384
        %449 = vmatprep.subr.mxu0 0.0
        %450 = vmatpush2.msra.mxu0 %v383
        %451 = vmatprep.subr.mxu0 0.0
        %452 = vmatpush2.msra.mxu0 %v382
        %453 = vmatprep.subr.mxu0 0.0
        %454 = vmatpush2.msra.mxu0 %v381
        %455 = vmatprep.subr.mxu0 0.0
        %456 = vmatpush2.msra.mxu0 %v380
        %457 = vmatprep.subr.mxu0 0.0
        %458 = vmatpush2.msra.mxu0 %v379
        %459 = vmatprep.mubr.f32.mxu0 %v300
        %460 = vmatmul.mubr.f32.gmra.mxu0 %v299
        %v461 = vpop.f32.mrf.mxu0
        %v462 = vadd.f32 0.0, %v461
        %v463 = vpop.f32.mrf.mxu0
        %464 = vmatprep.mubr.f32.mxu0 %v302
        %465 = vmatmul.mubr.f32.gmra.mxu0 %v301
        %v466 = vpop.f32.mrf.mxu0
        %v467 = vadd.f32 0.0, %v466
        %v468 = vpop.f32.mrf.mxu0
        %469 = vmatprep.mubr.f32.mxu0 %v304
        %470 = vmatmul.mubr.f32.gmra.mxu0 %v303
        %v471 = vpop.f32.mrf.mxu0
        %v472 = vadd.f32 0.0, %v471
        %v473 = vpop.f32.mrf.mxu0
        %474 = vmatprep.mubr.f32.mxu0 %v306
        %475 = vmatmul.mubr.f32.gmra.mxu0 %v305
        %v476 = vpop.f32.mrf.mxu0
        %v477 = vadd.f32 0.0, %v476
        %v478 = vpop.f32.mrf.mxu0
        %479 = vmatprep.mubr.f32.mxu0 %v308
        %480 = vmatmul.mubr.f32.gmra.mxu0 %v307
        %v481 = vpop.f32.mrf.mxu0
        %v482 = vadd.f32 0.0, %v481
        %v483 = vpop.f32.mrf.mxu0
        %484 = vmatprep.mubr.f32.mxu0 %v310
        %485 = vmatmul.mubr.f32.gmra.mxu0 %v309
        %v486 = vpop.f32.mrf.mxu0
        %v487 = vadd.f32 0.0, %v486
        %v488 = vpop.f32.mrf.mxu0
        %489 = vmatprep.mubr.f32.mxu0 %v312
        %490 = vmatmul.mubr.f32.gmra.mxu0 %v311
        %v491 = vpop.f32.mrf.mxu0
        %v492 = vadd.f32 0.0, %v491
        %v493 = vpop.f32.mrf.mxu0
        %494 = vmatprep.mubr.f32.mxu0 %v314
        %495 = vmatmul.mubr.f32.gmra.mxu0 %v313
        %v496 = vpop.f32.mrf.mxu0
        %v497 = vadd.f32 0.0, %v496
        %v498 = vpop.f32.mrf.mxu0
        %499 = vmatprep.mubr.f32.mxu0 %v316
        %500 = vmatmul.mubr.f32.gmra.mxu0 %v315
        %v501 = vpop.f32.mrf.mxu0
        %v502 = vadd.f32 0.0, %v501
        %v503 = vpop.f32.mrf.mxu0
        %504 = vmatprep.mubr.f32.mxu0 %v318
        %505 = vmatmul.mubr.f32.gmra.mxu0 %v317
        %v506 = vpop.f32.mrf.mxu0
        %v507 = vadd.f32 0.0, %v506
        %v508 = vpop.f32.mrf.mxu0
        %509 = vmatprep.mubr.f32.mxu0 %v320
        %510 = vmatmul.mubr.f32.gmra.mxu0 %v319
        %v511 = vpop.f32.mrf.mxu0
        %v512 = vadd.f32 0.0, %v511
        %v513 = vpop.f32.mrf.mxu0
        %514 = vmatprep.mubr.f32.mxu0 %v322
        %515 = vmatmul.mubr.f32.gmra.mxu0 %v321
        %v516 = vpop.f32.mrf.mxu0
        %v517 = vadd.f32 0.0, %v516
        %v518 = vpop.f32.mrf.mxu0
        %519 = vmatprep.mubr.f32.mxu0 %v324
        %520 = vmatmul.mubr.f32.gmra.mxu0 %v323
        %v521 = vpop.f32.mrf.mxu0
        %v522 = vadd.f32 0.0, %v521
        %v523 = vpop.f32.mrf.mxu0
        %524 = vmatprep.mubr.f32.mxu0 %v326
        %525 = vmatmul.mubr.f32.gmra.mxu0 %v325
        %v526 = vpop.f32.mrf.mxu0
        %v527 = vadd.f32 0.0, %v526
        %v528 = vpop.f32.mrf.mxu0
        %529 = vmatprep.mubr.f32.mxu0 %v328
        %530 = vmatmul.mubr.f32.gmra.mxu0 %v327
        %v531 = vpop.f32.mrf.mxu0
        %v532 = vadd.f32 0.0, %v531
        %v533 = vpop.f32.mrf.mxu0
        %534 = vmatprep.mubr.f32.mxu0 %v330
        %535 = vmatmul.mubr.f32.gmra.mxu0 %v329
        %v536 = vpop.f32.mrf.mxu0
        %v537 = vadd.f32 0.0, %v536
        %v538 = vpop.f32.mrf.mxu0
        %539 = vmatprep.mubr.f32.mxu0 %v332
        %540 = vmatmul.mubr.f32.gmra.mxu0 %v331
        %v541 = vpop.f32.mrf.mxu0
        %v542 = vadd.f32 0.0, %v541
        %v543 = vpop.f32.mrf.mxu0
        %544 = vmatprep.mubr.f32.mxu0 %v334
        %545 = vmatmul.mubr.f32.gmra.mxu0 %v333
        %v546 = vpop.f32.mrf.mxu0
        %v547 = vadd.f32 0.0, %v546
        %v548 = vpop.f32.mrf.mxu0
        %549 = vmatprep.mubr.f32.mxu0 %v336
        %550 = vmatmul.mubr.f32.gmra.mxu0 %v335
        %v551 = vpop.f32.mrf.mxu0
        %v552 = vadd.f32 0.0, %v551
        %v553 = vpop.f32.mrf.mxu0
        %554 = vmatprep.mubr.f32.mxu0 %v338
        %555 = vmatmul.mubr.f32.gmra.mxu0 %v337
        %v556 = vpop.f32.mrf.mxu0
        %v557 = vadd.f32 0.0, %v556
        %v558 = vpop.f32.mrf.mxu0
        %559 = vmatprep.mubr.f32.mxu0 %v340
        %560 = vmatmul.mubr.f32.gmra.mxu0 %v339
        %v561 = vpop.f32.mrf.mxu0
        %v562 = vadd.f32 0.0, %v561
        %v563 = vpop.f32.mrf.mxu0
        %564 = vmatprep.mubr.f32.mxu0 %v342
        %565 = vmatmul.mubr.f32.gmra.mxu0 %v341
        %v566 = vpop.f32.mrf.mxu0
        %v567 = vadd.f32 0.0, %v566
        %v568 = vpop.f32.mrf.mxu0
        %569 = vmatprep.mubr.f32.mxu0 %v344
        %570 = vmatmul.mubr.f32.gmra.mxu0 %v343
        %v571 = vpop.f32.mrf.mxu0
        %v572 = vadd.f32 0.0, %v571
        %v573 = vpop.f32.mrf.mxu0
        %574 = vmatprep.mubr.f32.mxu0 %v346
        %575 = vmatmul.mubr.f32.gmra.mxu0 %v345
        %v576 = vpop.f32.mrf.mxu0
        %v577 = vadd.f32 0.0, %v576
        %v578 = vpop.f32.mrf.mxu0
        %579 = vmatprep.mubr.f32.mxu0 %v348
        %580 = vmatmul.mubr.f32.gmra.mxu0 %v347
        %v581 = vpop.f32.mrf.mxu0
        %v582 = vadd.f32 0.0, %v581
        %v583 = vpop.f32.mrf.mxu0
        %584 = vmatprep.mubr.f32.mxu0 %v350
        %585 = vmatmul.mubr.f32.gmra.mxu0 %v349
        %v586 = vpop.f32.mrf.mxu0
        %v587 = vadd.f32 0.0, %v586
        %v588 = vpop.f32.mrf.mxu0
        %589 = vmatprep.mubr.f32.mxu0 %v352
        %590 = vmatmul.mubr.f32.gmra.mxu0 %v351
        %v591 = vpop.f32.mrf.mxu0
        %v592 = vadd.f32 0.0, %v591
        %v593 = vpop.f32.mrf.mxu0
        %594 = vmatprep.mubr.f32.mxu0 %v354
        %595 = vmatmul.mubr.f32.gmra.mxu0 %v353
        %v596 = vpop.f32.mrf.mxu0
        %v597 = vadd.f32 0.0, %v596
        %v598 = vpop.f32.mrf.mxu0
        %599 = vmatprep.mubr.f32.mxu0 %v356
        %600 = vmatmul.mubr.f32.gmra.mxu0 %v355
        %v601 = vpop.f32.mrf.mxu0
        %v602 = vadd.f32 0.0, %v601
        %v603 = vpop.f32.mrf.mxu0
        %604 = vmatprep.mubr.f32.mxu0 %v358
        %605 = vmatmul.mubr.f32.gmra.mxu0 %v357
        %v606 = vpop.f32.mrf.mxu0
        %v607 = vadd.f32 0.0, %v606
        %v608 = vpop.f32.mrf.mxu0
        %609 = vmatprep.mubr.f32.mxu0 %v360
        %610 = vmatmul.mubr.f32.gmra.mxu0 %v359
        %v611 = vpop.f32.mrf.mxu0
        %v612 = vadd.f32 0.0, %v611
        %v613 = vpop.f32.mrf.mxu0
        %614 = vmatprep.mubr.f32.mxu0 %v362
        %615 = vmatmul.mubr.f32.gmra.mxu0 %v361
        %v616 = vpop.f32.mrf.mxu0
        %v617 = vadd.f32 0.0, %v616
        %v618 = vpop.f32.mrf.mxu0
        %619 = vdwg.mxu0
        %v620 = vadd.f32 %v267, %v462
        %v621 = vadd.f32 %v268, %v467
        %v622 = vadd.f32 %v269, %v472
        %v623 = vadd.f32 %v270, %v477
        %v624 = vadd.f32 %v271, %v482
        %v625 = vadd.f32 %v272, %v487
        %v626 = vadd.f32 %v273, %v492
        %v627 = vadd.f32 %v274, %v497
        %v628 = vadd.f32 %v275, %v502
        %v629 = vadd.f32 %v276, %v507
        %v630 = vadd.f32 %v277, %v512
        %v631 = vadd.f32 %v278, %v517
        %v632 = vadd.f32 %v279, %v522
        %v633 = vadd.f32 %v280, %v527
        %v634 = vadd.f32 %v281, %v532
        %v635 = vadd.f32 %v282, %v537
        %v636 = vadd.f32 %v283, %v542
        %v637 = vadd.f32 %v284, %v547
        %v638 = vadd.f32 %v285, %v552
        %v639 = vadd.f32 %v286, %v557
        %v640 = vadd.f32 %v287, %v562
        %v641 = vadd.f32 %v288, %v567
        %v642 = vadd.f32 %v289, %v572
        %v643 = vadd.f32 %v290, %v577
        %v644 = vadd.f32 %v291, %v582
        %v645 = vadd.f32 %v292, %v587
        %v646 = vadd.f32 %v293, %v592
        %v647 = vadd.f32 %v294, %v597
        %v648 = vadd.f32 %v295, %v602
        %v649 = vadd.f32 %v296, %v607
        %v650 = vadd.f32 %v297, %v612
        %v651 = vadd.f32 %v298, %v617
        %652 = vst [vmem:[#allocation2] sm:$0xff] %v620
        %653 = vst [vmem:[#allocation2 + $0x8] sm:$0xff] %v621
        %654 = vst [vmem:[#allocation2 + $0x10] sm:$0xff] %v622
        %655 = vst [vmem:[#allocation2 + $0x18] sm:$0xff] %v623
        %656 = vst [vmem:[#allocation2 + $0x20] sm:$0xff] %v624
        %657 = vst [vmem:[#allocation2 + $0x28] sm:$0xff] %v625
        %658 = vst [vmem:[#allocation2 + $0x30] sm:$0xff] %v626
        %659 = vst [vmem:[#allocation2 + $0x38] sm:$0xff] %v627
        %660 = vst [vmem:[#allocation2 + $0x40] sm:$0xff] %v628
        %661 = vst [vmem:[#allocation2 + $0x48] sm:$0xff] %v629
        %662 = vst [vmem:[#allocation2 + $0x50] sm:$0xff] %v630
        %663 = vst [vmem:[#allocation2 + $0x58] sm:$0xff] %v631
        %664 = vst [vmem:[#allocation2 + $0x60] sm:$0xff] %v632
        %665 = vst [vmem:[#allocation2 + $0x68] sm:$0xff] %v633
        %666 = vst [vmem:[#allocation2 + $0x70] sm:$0xff] %v634
        %667 = vst [vmem:[#allocation2 + $0x78] sm:$0xff] %v635
        %668 = vst [vmem:[#allocation2 + $0x80] sm:$0xff] %v636
        %669 = vst [vmem:[#allocation2 + $0x88] sm:$0xff] %v637
        %670 = vst [vmem:[#allocation2 + $0x90] sm:$0xff] %v638
        %671 = vst [vmem:[#allocation2 + $0x98] sm:$0xff] %v639
        %672 = vst [vmem:[#allocation2 + $0xa0] sm:$0xff] %v640
        %673 = vst [vmem:[#allocation2 + $0xa8] sm:$0xff] %v641
        %674 = vst [vmem:[#allocation2 + $0xb0] sm:$0xff] %v642
        %675 = vst [vmem:[#allocation2 + $0xb8] sm:$0xff] %v643
        %676 = vst [vmem:[#allocation2 + $0xc0] sm:$0xff] %v644
        %677 = vst [vmem:[#allocation2 + $0xc8] sm:$0xff] %v645
        %678 = vst [vmem:[#allocation2 + $0xd0] sm:$0xff] %v646
        %679 = vst [vmem:[#allocation2 + $0xd8] sm:$0xff] %v647
        %680 = vst [vmem:[#allocation2 + $0xe0] sm:$0xff] %v648
        %681 = vst [vmem:[#allocation2 + $0xe8] sm:$0xff] %v649
        %682 = vst [vmem:[#allocation2 + $0xf0] sm:$0xff] %v650
        %683 = vst [vmem:[#allocation2 + $0xf8] sm:$0xff] %v651
        %p684 = scmp.eq.s32.totalorder %s25, 1
        // Predicated region
        $region41: #{graph_convolution.3} parent=31 // pred_check
          %p685 = pneg %p684
        $region42: #{graph_convolution.3} parent=31 // pred_check_branch
          %687 = sbr.rel (%p685) target = $region44
        $region43: #{graph_convolution.3} parent=31 // pred_region
          %v688 = vld [vmem:[#allocation2] sm:$0xff]
          %v689 = vld [vmem:[#allocation2 + $0x8] sm:$0xff]
          %v690 = vld [vmem:[#allocation2 + $0x10] sm:$0xff]
          %v691 = vld [vmem:[#allocation2 + $0x18] sm:$0xff]
          %v692 = vld [vmem:[#allocation2 + $0x20] sm:$0xff]
          %v693 = vld [vmem:[#allocation2 + $0x28] sm:$0xff]
          %v694 = vld [vmem:[#allocation2 + $0x30] sm:$0xff]
          %v695 = vld [vmem:[#allocation2 + $0x38] sm:$0xff]
          %v696 = vld [vmem:[#allocation2 + $0x40] sm:$0xff]
          %v697 = vld [vmem:[#allocation2 + $0x48] sm:$0xff]
          %v698 = vld [vmem:[#allocation2 + $0x50] sm:$0xff]
          %v699 = vld [vmem:[#allocation2 + $0x58] sm:$0xff]
          %v700 = vld [vmem:[#allocation2 + $0x60] sm:$0xff]
          %v701 = vld [vmem:[#allocation2 + $0x68] sm:$0xff]
          %v702 = vld [vmem:[#allocation2 + $0x70] sm:$0xff]
          %v703 = vld [vmem:[#allocation2 + $0x78] sm:$0xff]
          %v704 = vld [vmem:[#allocation2 + $0x80] sm:$0xff]
          %v705 = vld [vmem:[#allocation2 + $0x88] sm:$0xff]
          %v706 = vld [vmem:[#allocation2 + $0x90] sm:$0xff]
          %v707 = vld [vmem:[#allocation2 + $0x98] sm:$0xff]
          %v708 = vld [vmem:[#allocation2 + $0xa0] sm:$0xff]
          %v709 = vld [vmem:[#allocation2 + $0xa8] sm:$0xff]
          %v710 = vld [vmem:[#allocation2 + $0xb0] sm:$0xff]
          %v711 = vld [vmem:[#allocation2 + $0xb8] sm:$0xff]
          %v712 = vld [vmem:[#allocation2 + $0xc0] sm:$0xff]
          %v713 = vld [vmem:[#allocation2 + $0xc8] sm:$0xff]
          %v714 = vld [vmem:[#allocation2 + $0xd0] sm:$0xff]
          %v715 = vld [vmem:[#allocation2 + $0xd8] sm:$0xff]
          %v716 = vld [vmem:[#allocation2 + $0xe0] sm:$0xff]
          %v717 = vld [vmem:[#allocation2 + $0xe8] sm:$0xff]
          %v718 = vld [vmem:[#allocation2 + $0xf0] sm:$0xff]
          %v719 = vld [vmem:[#allocation2 + $0xf8] sm:$0xff]
          %v720 = vld [vmem:[%s2] sm:$0x1]
          %v722 = vlaneseq
          %v723 = vshrl.u32 %v722, 7
          %v724 = vsub.s32 0, %v723
          %v725 = vrot.slane %v720, %v724
          %v727 = vadd.f32 %v688, %v725
          %v728 = vadd.f32 %v689, %v725
          %v729 = vadd.f32 %v690, %v725
          %v730 = vadd.f32 %v691, %v725
          %v731 = vadd.f32 %v692, %v725
          %v732 = vadd.f32 %v693, %v725
          %v733 = vadd.f32 %v694, %v725
          %v734 = vadd.f32 %v695, %v725
          %v735 = vadd.f32 %v696, %v725
          %v736 = vadd.f32 %v697, %v725
          %v737 = vadd.f32 %v698, %v725
          %v738 = vadd.f32 %v699, %v725
          %v739 = vadd.f32 %v700, %v725
          %v740 = vadd.f32 %v701, %v725
          %v741 = vadd.f32 %v702, %v725
          %v742 = vadd.f32 %v703, %v725
          %v743 = vadd.f32 %v704, %v725
          %v744 = vadd.f32 %v705, %v725
          %v745 = vadd.f32 %v706, %v725
          %v746 = vadd.f32 %v707, %v725
          %v747 = vadd.f32 %v708, %v725
          %v748 = vadd.f32 %v709, %v725
          %v749 = vadd.f32 %v710, %v725
          %v750 = vadd.f32 %v711, %v725
          %v751 = vadd.f32 %v712, %v725
          %v752 = vadd.f32 %v713, %v725
          %v753 = vadd.f32 %v714, %v725
          %v754 = vadd.f32 %v715, %v725
          %v755 = vadd.f32 %v716, %v725
          %v756 = vadd.f32 %v717, %v725
          %v757 = vadd.f32 %v718, %v725
          %v758 = vadd.f32 %v719, %v725
          %759 = vst [vmem:[%s221] sm:$0xff] %v727
          %760 = vst [vmem:[%s221 + $0x8] sm:$0xff] %v728
          %761 = vst [vmem:[%s221 + $0x10] sm:$0xff] %v729
          %762 = vst [vmem:[%s221 + $0x18] sm:$0xff] %v730
          %763 = vst [vmem:[%s221 + $0x20] sm:$0xff] %v731
          %764 = vst [vmem:[%s221 + $0x28] sm:$0xff] %v732
          %765 = vst [vmem:[%s221 + $0x30] sm:$0xff] %v733
          %766 = vst [vmem:[%s221 + $0x38] sm:$0xff] %v734
          %767 = vst [vmem:[%s221 + $0x40] sm:$0xff] %v735
          %768 = vst [vmem:[%s221 + $0x48] sm:$0xff] %v736
          %769 = vst [vmem:[%s221 + $0x50] sm:$0xff] %v737
          %770 = vst [vmem:[%s221 + $0x58] sm:$0xff] %v738
          %771 = vst [vmem:[%s221 + $0x60] sm:$0xff] %v739
          %772 = vst [vmem:[%s221 + $0x68] sm:$0xff] %v740
          %773 = vst [vmem:[%s221 + $0x70] sm:$0xff] %v741
          %774 = vst [vmem:[%s221 + $0x78] sm:$0xff] %v742
          %775 = vst [vmem:[%s221 + $0x80] sm:$0xff] %v743
          %776 = vst [vmem:[%s221 + $0x88] sm:$0xff] %v744
          %777 = vst [vmem:[%s221 + $0x90] sm:$0xff] %v745
          %778 = vst [vmem:[%s221 + $0x98] sm:$0xff] %v746
          %779 = vst [vmem:[%s221 + $0xa0] sm:$0xff] %v747
          %780 = vst [vmem:[%s221 + $0xa8] sm:$0xff] %v748
          %781 = vst [vmem:[%s221 + $0xb0] sm:$0xff] %v749
          %782 = vst [vmem:[%s221 + $0xb8] sm:$0xff] %v750
          %783 = vst [vmem:[%s221 + $0xc0] sm:$0xff] %v751
          %784 = vst [vmem:[%s221 + $0xc8] sm:$0xff] %v752
          %785 = vst [vmem:[%s221 + $0xd0] sm:$0xff] %v753
          %786 = vst [vmem:[%s221 + $0xd8] sm:$0xff] %v754
          %787 = vst [vmem:[%s221 + $0xe0] sm:$0xff] %v755
          %788 = vst [vmem:[%s221 + $0xe8] sm:$0xff] %v756
          %789 = vst [vmem:[%s221 + $0xf0] sm:$0xff] %v757
          %790 = vst [vmem:[%s221 + $0xf8] sm:$0xff] %v758
        $region44: #{graph_convolution.3} parent=31 // pred_fallthru
          _
        %s791 = sand.u32 %s115, 1
        %s792 = scalar_lea.sflag [#allocation5], %s791
        %s793 = sand.u32 %s115, 1
        %s794 = smul.addr %s793, 256
        %s795 = scalar_lea.vmem [#allocation6], %s794
        // Predicated region
        $region45: #{graph_convolution.3} parent=31 // pred_check
          %p796 = pneg %p125
        $region46: #{graph_convolution.3} parent=31 // pred_check_branch
          %798 = sbr.rel (%p796) target = $region48
        $region47: #{graph_convolution.3} parent=31 // pred_region
          %s799 = smul.u32 32, %s24
          %s801 = ssub.s32 4096, 4096
          %802 = vsyncadd %s792, %s801
          %s803 = smul.addr %s799, 128
          %s804 = scalar_lea.hbm %s3, %s803
          %s805 = sshll.u32 %s795, 4
          %s806 = int_to_ptr.vmem [resolvable:$true] %s805
          %811 = dma.vmem_to_hbm [thread:$0]  %s806, 4096, %s804, %s792, 128, 128, 8
        $region48: #{graph_convolution.3} parent=31 // pred_fallthru
          _
      $region32: #{graph_convolution.3} parent=5 // pred_fallthru
        _
      %p812 = scmp.le.s32.totalorder 2, %s15
      // Predicated region
      $region49: #{graph_convolution.3} parent=5 // pred_check
        %p813 = pneg %p812
      $region50: #{graph_convolution.3} parent=5 // pred_check_branch
        %815 = sbr.rel (%p813) target = $region52
      $region51: #{graph_convolution.3} parent=5 // pred_region
        %s816 = ssub.s32 %s15, 2
        // Predicated region
        $region53: #{graph_convolution.3} parent=51 // pred_check
          %p817 = pneg %p131
        $region54: #{graph_convolution.3} parent=51 // pred_check_branch
          %819 = sbr.rel (%p817) target = $region56
        $region55: #{graph_convolution.3} parent=51 // pred_region
          %s820 = sand.u32 %s116, 1
          %s821 = scalar_lea.sflag [#allocation5], %s820
          %s822 = sand.u32 %s116, 1
          %s823 = smul.addr %s822, 256
          %s824 = scalar_lea.vmem [#allocation6], %s823
          %825 = dma.done %s821, 4096
        $region56: #{graph_convolution.3} parent=51 // pred_fallthru
          _
      $region52: #{graph_convolution.3} parent=5 // pred_fallthru
        _
    $region6: #{graph_convolution.3} parent=1 // loop_footer
      %s19 = sadd.s32 1, %s15
    $region7: #{graph_convolution.3} parent=1 // loop_footer_branch
      %14 = sbr.rel target = $region3
    $region8: #{graph_convolution.3} parent=1 // loop_exit
      _
    %826 = vsyncpa [#allocation4], 1
    %s827 = scalar_lea.sflag [#allocation4], 1
    %828 = vsyncpa %s827, 1
    %829 = vsyncpa [#allocation5], 1
    %s830 = scalar_lea.sflag [#allocation5], 1
    %831 = vsyncpa %s830, 1

</llo_original>
